<compile_context>
chip_gen: v7x
topology: tpu7x:2x2x1
jax: 0.10.0
libtpu: 0.0.40
codegen_flags: <defaults>
</compile_context>

<pallas_src>
import functools

import jax
import jax.numpy as jnp
from jax.experimental import pallas as pl
from jax.experimental.pallas import tpu as pltpu


def _center_edge_iou_kernel(x_ref, t_ref, border_ref, loss_ref, sums_ref, *,
                            n_class, width, edge_range, eps):
    C = n_class
    W = width
    R = edge_range
    HW = x_ref.shape[-1]

    x = x_ref[0].astype(jnp.float32)              # (C, HW) logits
    t_idx = t_ref[0]                              # (1, HW) int32 labels

    # ---- softmax over the class axis: one reciprocal + C multiplies ----
    xm = jnp.max(x, axis=0, keepdims=True)        # (1, HW)
    ex = jnp.exp(x - xm)                          # EUP
    inv_sum = pl.reciprocal(jnp.sum(ex, axis=0, keepdims=True), approx=False)
    p = ex * inv_sum                              # (C, HW)

    # ---- one-hot target and per-pixel IoU loss map ----
    ci = jax.lax.broadcasted_iota(jnp.int32, (C, HW), 0)
    t1h = (ci == t_idx).astype(jnp.float32)
    inter = p * t1h
    union = p + t1h - inter
    iou = (inter + eps) * pl.reciprocal(union + eps, approx=False)
    loss_ref[0] = (1.0 - iou).astype(loss_ref.dtype)

    # ---- predicted label map, reusing the logits max (argmax(p)==argmax(x)),
    #      first-max tie break like argmax ----
    cand = jnp.where(x == xm, ci, C)
    p_idx = jnp.min(cand, axis=0, keepdims=True)  # (1, HW) int32
    p_at_max = inv_sum                            # softmax prob at argmax class

    border = border_ref[...] > 0.5                # (1, HW) bool, forced edges

    def window_not_uniform(lbl):
        """True where the KxK window holds a label different from the centre.

        Separable windowed min/max on the flat (1, H*W) label map using
        circular pltpu.roll; wrapped values only reach pixels within R of the
        image border, and those are forced edges by `border` (zero padding).
        """
        rmin = lbl
        rmax = lbl
        for s in range(1, R + 1):                 # along W (lane axis)
            for sh in (s % HW, (HW - s) % HW):
                r = pltpu.roll(lbl, shift=sh, axis=1)
                rmin = jnp.minimum(rmin, r)
                rmax = jnp.maximum(rmax, r)
        wmin = rmin
        wmax = rmax
        for s in range(1, R + 1):                 # along H (stride-W rolls)
            for sh in ((s * W) % HW, (HW - s * W) % HW):
                wmin = jnp.minimum(wmin, pltpu.roll(rmin, shift=sh, axis=1))
                wmax = jnp.maximum(wmax, pltpu.roll(rmax, shift=sh, axis=1))
        return wmin != wmax

    edge_p = border | window_not_uniform(p_idx)   # predicted-edge pixels
    edge_t = border | window_not_uniform(t_idx)   # target-edge pixels

    # Global edge-IoU partial sums, reduced per pixel (O(H*W)):
    #   sum(p * edge_p)          == sum of max prob over predicted-edge pixels
    #   sum(t1h * edge_t)        == number of target-edge pixels
    #   sum(p*edge_p*t1h*edge_t) == max prob where both edges and pred==target
    s_pred = jnp.sum(jnp.where(edge_p, p_at_max, 0.0))
    s_tgt = jnp.sum(edge_t.astype(jnp.float32))
    s_inter = jnp.sum(
        jnp.where(edge_p & edge_t & (p_idx == t_idx), p_at_max, 0.0))

    lane = jax.lax.broadcasted_iota(jnp.int32, sums_ref.shape, 2)
    vals = jnp.where(lane == 0, s_inter, 0.0)
    vals = vals + jnp.where(lane == 1, s_pred, 0.0)
    vals = vals + jnp.where(lane == 2, s_tgt, 0.0)
    sums_ref[...] = vals


def center_edge_iou_loss_pallas(outputs, targets, edge_range=3, lamda=1.0):
    """Center_Edge_IoULoss forward.

    outputs: (N, C, H, W) logits; targets: (N, H, W) integer labels.
    Returns the (N, C, H, W) loss tensor: 1 - per-pixel IoU + lamda * (1 -
    global edge IoU), same semantics as the PyTorch module.
    """
    N, C, H, W = outputs.shape
    HW = H * W
    R = int(edge_range)
    eps = 1e-24

    # Free reshapes of contiguous NCHW: lane-dense last axis for all the heavy
    # elementwise work and for the loss-map stores.
    x_flat = outputs.reshape(N, C, HW)
    t_flat = targets.astype(jnp.int32).reshape(N, 1, HW)

    # Pixels whose KxK window crosses the image border are always edges under
    # the zero-padded smoothing; precompute that static mask once.
    hh = jnp.arange(H, dtype=jnp.int32).reshape(H, 1)
    ww = jnp.arange(W, dtype=jnp.int32).reshape(1, W)
    border2d = (hh < R) | (hh >= H - R) | (ww < R) | (ww >= W - R)
    border = border2d.reshape(1, HW).astype(jnp.float32)

    kernel = functools.partial(_center_edge_iou_kernel, n_class=C, width=W,
                               edge_range=R, eps=float(eps))

    loss_flat, part = pl.pallas_call(
        kernel,
        out_shape=(jax.ShapeDtypeStruct((N, C, HW), outputs.dtype),
                   jax.ShapeDtypeStruct((N, 1, 128), jnp.float32)),
        grid_spec=pltpu.PrefetchScalarGridSpec(
            num_scalar_prefetch=0,
            grid=(N,),
            in_specs=[
                pl.BlockSpec((1, C, HW), lambda n: (n, 0, 0)),
                pl.BlockSpec((1, 1, HW), lambda n: (n, 0, 0)),
                pl.BlockSpec((1, HW), lambda n: (0, 0)),
            ],
            out_specs=[
                pl.BlockSpec((1, C, HW), lambda n: (n, 0, 0)),
                pl.BlockSpec((1, 1, 128), lambda n: (n, 0, 0)),
            ],
        ),
        compiler_params=pltpu.CompilerParams(
            dimension_semantics=("parallel",),
            vmem_limit_bytes=56 * 1024 * 1024),
    )(x_flat, t_flat, border)

    # Global (batch-wide) edge IoU from the lane-dense per-image partial sums.
    s_inter = jnp.sum(part[:, 0, 0])
    s_pred = jnp.sum(part[:, 0, 1])
    s_tgt = jnp.sum(part[:, 0, 2])
    union_e = s_pred + s_tgt - s_inter
    edge_iou = (s_inter + eps) / (union_e + eps)

    loss_map = loss_flat.reshape(N, C, H, W).astype(jnp.float32)
    return loss_map + lamda * (1.0 - edge_iou)


def center_edge_iou_loss_ref(outputs, targets, edge_range=3, lamda=1.0):
    """Plain-JAX reference mirroring the PyTorch module (documented TODOs)."""
    N, C, H, W = outputs.shape
    eps = 1e-24
    p = jax.nn.softmax(outputs.astype(jnp.float32), axis=1)
    t1h = jax.nn.one_hot(targets, C, axis=1, dtype=jnp.float32)

    inter = p * t1h
    union = p + t1h - inter
    iou = (inter + eps) / (union + eps)

    pred_idx = jnp.argmax(p, axis=1)
    p1h = jax.nn.one_hot(pred_idx, C, axis=1, dtype=jnp.float32)

    K = 2 * edge_range + 1

    def boxsum(s):
        return jax.lax.reduce_window(
            s, 0.0, jax.lax.add,
            window_dimensions=(1, 1, K, K),
            window_strides=(1, 1, 1, 1),
            padding=((0, 0), (0, 0),
                     (edge_range, edge_range), (edge_range, edge_range)))

    kk = float(K * K)
    edge_p = ((p1h > 0.5) & (boxsum(p1h) != kk)).astype(jnp.float32)
    edge_t = ((t1h > 0.5) & (boxsum(t1h) != kk)).astype(jnp.float32)

    s_inter = jnp.sum(p * edge_p * t1h * edge_t)
    s_pred = jnp.sum(p * edge_p)
    s_tgt = jnp.sum(t1h * edge_t)
    union_e = s_pred + s_tgt - s_inter
    edge_iou = (s_inter + eps) / (union_e + eps)

    return 1.0 - iou + lamda * (1.0 - edge_iou)


if __name__ == "__main__":
    key = jax.random.PRNGKey(0)
    k1, k2 = jax.random.split(key)

    N, C, H, W = 2, 4, 16, 16
    edge_range = 3
    lamda = 1.0

    logits = jax.random.normal(k1, (N, C, H, W), dtype=jnp.float32)
    targets = jax.random.randint(k2, (N, H, W), 0, C, dtype=jnp.int32)

    out = center_edge_iou_loss_pallas(logits, targets,
                                      edge_range=edge_range, lamda=lamda)
    out = jax.block_until_ready(out)

    ref = center_edge_iou_loss_ref(logits, targets,
                                   edge_range=edge_range, lamda=lamda)

    assert out.shape == (N, C, H, W), out.shape
    assert jnp.allclose(out, ref, rtol=1e-5, atol=1e-5), (
        float(jnp.max(jnp.abs(out - ref))))

    print("KERNEL_OK")
</pallas_src>

<mosaic_0001>
module attributes {stable_mosaic.version = 11 : i64} {
  func.func @_center_edge_iou_kernel(%arg0: i32, %arg1: memref<1x4x256xf32, #tpu.memory_space<vmem>>, %arg2: memref<1x1x256xi32, #tpu.memory_space<vmem>>, %arg3: memref<1x256xf32, #tpu.memory_space<vmem>>, %arg4: memref<1x4x256xf32, #tpu.memory_space<vmem>>, %arg5: memref<1x1x128xf32, #tpu.memory_space<vmem>>) attributes {dimension_semantics = [#tpu.dimension_semantics<parallel>], iteration_bounds = array<i64: 2>, scalar_prefetch = 0 : i64, scratch_operands = 0 : i64, tpu.core_type = #tpu.core_type<tc>, window_params = [{transform_indices = @transform_0, window_bounds = array<i64: 1, 4, 256>}, {transform_indices = @transform_1, window_bounds = array<i64: 1, 1, 256>}, {pipeline_mode = #tpu.pipeline_mode<synchronous>, transform_indices = @transform_2, window_bounds = array<i64: 1, 256>}, {transform_indices = @transform_3, window_bounds = array<i64: 1, 4, 256>}, {transform_indices = @transform_4, window_bounds = array<i64: 1, 1, 128>}]} {
    %c0 = arith.constant 0 : index
    %c0_0 = arith.constant 0 : index
    %c0_1 = arith.constant 0 : index
    %0 = vector.load %arg1[%c0, %c0_0, %c0_1] : memref<1x4x256xf32, #tpu.memory_space<vmem>>, vector<1x4x256xf32>
    %1 = vector.shape_cast %0 : vector<1x4x256xf32> to vector<4x256xf32>
    %c0_2 = arith.constant 0 : index
    %c0_3 = arith.constant 0 : index
    %c0_4 = arith.constant 0 : index
    %2 = vector.load %arg2[%c0_2, %c0_3, %c0_4] : memref<1x1x256xi32, #tpu.memory_space<vmem>>, vector<1x1x256xi32>
    %3 = vector.shape_cast %2 : vector<1x1x256xi32> to vector<1x256xi32>
    %cst = arith.constant dense<0xFF800000> : vector<256xf32>
    %4 = vector.multi_reduction <maximumf>, %1, %cst [0] : vector<4x256xf32> to vector<256xf32>
    %5 = vector.shape_cast %4 : vector<256xf32> to vector<1x256xf32>
    %6 = vector.broadcast %5 : vector<1x256xf32> to vector<4x256xf32>
    %7 = arith.subf %1, %6 : vector<4x256xf32>
    %8 = math.exp %7 : vector<4x256xf32>
    %cst_5 = arith.constant dense<0.000000e+00> : vector<256xf32>
    %9 = vector.multi_reduction <add>, %8, %cst_5 [0] : vector<4x256xf32> to vector<256xf32>
    %10 = vector.shape_cast %9 : vector<256xf32> to vector<1x256xf32>
    %11 = tpu.reciprocal %10 : vector<1x256xf32> -> vector<1x256xf32>
    %12 = vector.broadcast %11 : vector<1x256xf32> to vector<4x256xf32>
    %13 = arith.mulf %8, %12 : vector<4x256xf32>
    %14 = tpu.iota {dimensions = array<i32: 0>} : vector<4x256xi32>
    %15 = vector.broadcast %3 : vector<1x256xi32> to vector<4x256xi32>
    %16 = arith.cmpi eq, %14, %15 : vector<4x256xi32>
    %17 = arith.extui %16 : vector<4x256xi1> to vector<4x256xi32>
    %18 = arith.sitofp %17 : vector<4x256xi32> to vector<4x256xf32>
    %19 = arith.mulf %13, %18 : vector<4x256xf32>
    %20 = arith.addf %13, %18 : vector<4x256xf32>
    %21 = arith.subf %20, %19 : vector<4x256xf32>
    %cst_6 = arith.constant 1.000000e-24 : f32
    %22 = vector.broadcast %cst_6 : f32 to vector<4x256xf32>
    %23 = arith.addf %19, %22 : vector<4x256xf32>
    %cst_7 = arith.constant 1.000000e-24 : f32
    %24 = vector.broadcast %cst_7 : f32 to vector<4x256xf32>
    %25 = arith.addf %21, %24 : vector<4x256xf32>
    %26 = tpu.reciprocal %25 : vector<4x256xf32> -> vector<4x256xf32>
    %27 = arith.mulf %23, %26 : vector<4x256xf32>
    %cst_8 = arith.constant 1.000000e+00 : f32
    %28 = vector.broadcast %cst_8 : f32 to vector<4x256xf32>
    %29 = arith.subf %28, %27 : vector<4x256xf32>
    %c0_9 = arith.constant 0 : index
    %c0_10 = arith.constant 0 : index
    %c0_11 = arith.constant 0 : index
    %30 = vector.load %arg4[%c0_9, %c0_10, %c0_11] : memref<1x4x256xf32, #tpu.memory_space<vmem>>, vector<1x4x256xf32>
    %31 = vector.shape_cast %30 : vector<1x4x256xf32> to vector<4x256xf32>
    %32 = vector.shape_cast %29 : vector<4x256xf32> to vector<1x4x256xf32>
    tpu.vector_store %arg4[%c0_9, %c0_10, %c0_11], %32 {strides = array<i32>} : memref<1x4x256xf32, #tpu.memory_space<vmem>>, vector<1x4x256xf32>,
    %33 = vector.broadcast %5 : vector<1x256xf32> to vector<4x256xf32>
    %34 = arith.cmpf oeq, %1, %33 : vector<4x256xf32>
    %c4_i32 = arith.constant 4 : i32
    %35 = vector.broadcast %c4_i32 : i32 to vector<4x256xi32>
    %36 = arith.select %34, %14, %35 : vector<4x256xi1>, vector<4x256xi32>
    %cst_12 = arith.constant dense<2147483647> : vector<256xi32>
    %37 = vector.multi_reduction <minsi>, %36, %cst_12 [0] : vector<4x256xi32> to vector<256xi32>
    %38 = vector.shape_cast %37 : vector<256xi32> to vector<1x256xi32>
    %c0_13 = arith.constant 0 : index
    %c0_14 = arith.constant 0 : index
    %39 = vector.load %arg3[%c0_13, %c0_14] : memref<1x256xf32, #tpu.memory_space<vmem>>, vector<1x256xf32>
    %cst_15 = arith.constant 5.000000e-01 : f32
    %40 = vector.broadcast %cst_15 : f32 to vector<1x256xf32>
    %41 = arith.cmpf ogt, %39, %40 : vector<1x256xf32>
    %c1_i32 = arith.constant 1 : i32
    %42 = tpu.dynamic_rotate %38 by %c1_i32 dim 1 : vector<1x256xi32>, i32 -> vector<1x256xi32>
    %43 = arith.minsi %38, %42 : vector<1x256xi32>
    %44 = arith.maxsi %38, %42 : vector<1x256xi32>
    %c255_i32 = arith.constant 255 : i32
    %45 = tpu.dynamic_rotate %38 by %c255_i32 dim 1 : vector<1x256xi32>, i32 -> vector<1x256xi32>
    %46 = arith.minsi %43, %45 : vector<1x256xi32>
    %47 = arith.maxsi %44, %45 : vector<1x256xi32>
    %c2_i32 = arith.constant 2 : i32
    %48 = tpu.dynamic_rotate %38 by %c2_i32 dim 1 : vector<1x256xi32>, i32 -> vector<1x256xi32>
    %49 = arith.minsi %46, %48 : vector<1x256xi32>
    %50 = arith.maxsi %47, %48 : vector<1x256xi32>
    %c254_i32 = arith.constant 254 : i32
    %51 = tpu.dynamic_rotate %38 by %c254_i32 dim 1 : vector<1x256xi32>, i32 -> vector<1x256xi32>
    %52 = arith.minsi %49, %51 : vector<1x256xi32>
    %53 = arith.maxsi %50, %51 : vector<1x256xi32>
    %c3_i32 = arith.constant 3 : i32
    %54 = tpu.dynamic_rotate %38 by %c3_i32 dim 1 : vector<1x256xi32>, i32 -> vector<1x256xi32>
    %55 = arith.minsi %52, %54 : vector<1x256xi32>
    %56 = arith.maxsi %53, %54 : vector<1x256xi32>
    %c253_i32 = arith.constant 253 : i32
    %57 = tpu.dynamic_rotate %38 by %c253_i32 dim 1 : vector<1x256xi32>, i32 -> vector<1x256xi32>
    %58 = arith.minsi %55, %57 : vector<1x256xi32>
    %59 = arith.maxsi %56, %57 : vector<1x256xi32>
    %c16_i32 = arith.constant 16 : i32
    %60 = tpu.dynamic_rotate %58 by %c16_i32 dim 1 : vector<1x256xi32>, i32 -> vector<1x256xi32>
    %61 = arith.minsi %58, %60 : vector<1x256xi32>
    %c16_i32_16 = arith.constant 16 : i32
    %62 = tpu.dynamic_rotate %59 by %c16_i32_16 dim 1 : vector<1x256xi32>, i32 -> vector<1x256xi32>
    %63 = arith.maxsi %59, %62 : vector<1x256xi32>
    %c240_i32 = arith.constant 240 : i32
    %64 = tpu.dynamic_rotate %58 by %c240_i32 dim 1 : vector<1x256xi32>, i32 -> vector<1x256xi32>
    %65 = arith.minsi %61, %64 : vector<1x256xi32>
    %c240_i32_17 = arith.constant 240 : i32
    %66 = tpu.dynamic_rotate %59 by %c240_i32_17 dim 1 : vector<1x256xi32>, i32 -> vector<1x256xi32>
    %67 = arith.maxsi %63, %66 : vector<1x256xi32>
    %c32_i32 = arith.constant 32 : i32
    %68 = tpu.dynamic_rotate %58 by %c32_i32 dim 1 : vector<1x256xi32>, i32 -> vector<1x256xi32>
    %69 = arith.minsi %65, %68 : vector<1x256xi32>
    %c32_i32_18 = arith.constant 32 : i32
    %70 = tpu.dynamic_rotate %59 by %c32_i32_18 dim 1 : vector<1x256xi32>, i32 -> vector<1x256xi32>
    %71 = arith.maxsi %67, %70 : vector<1x256xi32>
    %c224_i32 = arith.constant 224 : i32
    %72 = tpu.dynamic_rotate %58 by %c224_i32 dim 1 : vector<1x256xi32>, i32 -> vector<1x256xi32>
    %73 = arith.minsi %69, %72 : vector<1x256xi32>
    %c224_i32_19 = arith.constant 224 : i32
    %74 = tpu.dynamic_rotate %59 by %c224_i32_19 dim 1 : vector<1x256xi32>, i32 -> vector<1x256xi32>
    %75 = arith.maxsi %71, %74 : vector<1x256xi32>
    %c48_i32 = arith.constant 48 : i32
    %76 = tpu.dynamic_rotate %58 by %c48_i32 dim 1 : vector<1x256xi32>, i32 -> vector<1x256xi32>
    %77 = arith.minsi %73, %76 : vector<1x256xi32>
    %c48_i32_20 = arith.constant 48 : i32
    %78 = tpu.dynamic_rotate %59 by %c48_i32_20 dim 1 : vector<1x256xi32>, i32 -> vector<1x256xi32>
    %79 = arith.maxsi %75, %78 : vector<1x256xi32>
    %c208_i32 = arith.constant 208 : i32
    %80 = tpu.dynamic_rotate %58 by %c208_i32 dim 1 : vector<1x256xi32>, i32 -> vector<1x256xi32>
    %81 = arith.minsi %77, %80 : vector<1x256xi32>
    %c208_i32_21 = arith.constant 208 : i32
    %82 = tpu.dynamic_rotate %59 by %c208_i32_21 dim 1 : vector<1x256xi32>, i32 -> vector<1x256xi32>
    %83 = arith.maxsi %79, %82 : vector<1x256xi32>
    %84 = arith.cmpi ne, %81, %83 : vector<1x256xi32>
    %85 = arith.ori %41, %84 : vector<1x256xi1>
    %c1_i32_22 = arith.constant 1 : i32
    %86 = tpu.dynamic_rotate %3 by %c1_i32_22 dim 1 : vector<1x256xi32>, i32 -> vector<1x256xi32>
    %87 = arith.minsi %3, %86 : vector<1x256xi32>
    %88 = arith.maxsi %3, %86 : vector<1x256xi32>
    %c255_i32_23 = arith.constant 255 : i32
    %89 = tpu.dynamic_rotate %3 by %c255_i32_23 dim 1 : vector<1x256xi32>, i32 -> vector<1x256xi32>
    %90 = arith.minsi %87, %89 : vector<1x256xi32>
    %91 = arith.maxsi %88, %89 : vector<1x256xi32>
    %c2_i32_24 = arith.constant 2 : i32
    %92 = tpu.dynamic_rotate %3 by %c2_i32_24 dim 1 : vector<1x256xi32>, i32 -> vector<1x256xi32>
    %93 = arith.minsi %90, %92 : vector<1x256xi32>
    %94 = arith.maxsi %91, %92 : vector<1x256xi32>
    %c254_i32_25 = arith.constant 254 : i32
    %95 = tpu.dynamic_rotate %3 by %c254_i32_25 dim 1 : vector<1x256xi32>, i32 -> vector<1x256xi32>
    %96 = arith.minsi %93, %95 : vector<1x256xi32>
    %97 = arith.maxsi %94, %95 : vector<1x256xi32>
    %c3_i32_26 = arith.constant 3 : i32
    %98 = tpu.dynamic_rotate %3 by %c3_i32_26 dim 1 : vector<1x256xi32>, i32 -> vector<1x256xi32>
    %99 = arith.minsi %96, %98 : vector<1x256xi32>
    %100 = arith.maxsi %97, %98 : vector<1x256xi32>
    %c253_i32_27 = arith.constant 253 : i32
    %101 = tpu.dynamic_rotate %3 by %c253_i32_27 dim 1 : vector<1x256xi32>, i32 -> vector<1x256xi32>
    %102 = arith.minsi %99, %101 : vector<1x256xi32>
    %103 = arith.maxsi %100, %101 : vector<1x256xi32>
    %c16_i32_28 = arith.constant 16 : i32
    %104 = tpu.dynamic_rotate %102 by %c16_i32_28 dim 1 : vector<1x256xi32>, i32 -> vector<1x256xi32>
    %105 = arith.minsi %102, %104 : vector<1x256xi32>
    %c16_i32_29 = arith.constant 16 : i32
    %106 = tpu.dynamic_rotate %103 by %c16_i32_29 dim 1 : vector<1x256xi32>, i32 -> vector<1x256xi32>
    %107 = arith.maxsi %103, %106 : vector<1x256xi32>
    %c240_i32_30 = arith.constant 240 : i32
    %108 = tpu.dynamic_rotate %102 by %c240_i32_30 dim 1 : vector<1x256xi32>, i32 -> vector<1x256xi32>
    %109 = arith.minsi %105, %108 : vector<1x256xi32>
    %c240_i32_31 = arith.constant 240 : i32
    %110 = tpu.dynamic_rotate %103 by %c240_i32_31 dim 1 : vector<1x256xi32>, i32 -> vector<1x256xi32>
    %111 = arith.maxsi %107, %110 : vector<1x256xi32>
    %c32_i32_32 = arith.constant 32 : i32
    %112 = tpu.dynamic_rotate %102 by %c32_i32_32 dim 1 : vector<1x256xi32>, i32 -> vector<1x256xi32>
    %113 = arith.minsi %109, %112 : vector<1x256xi32>
    %c32_i32_33 = arith.constant 32 : i32
    %114 = tpu.dynamic_rotate %103 by %c32_i32_33 dim 1 : vector<1x256xi32>, i32 -> vector<1x256xi32>
    %115 = arith.maxsi %111, %114 : vector<1x256xi32>
    %c224_i32_34 = arith.constant 224 : i32
    %116 = tpu.dynamic_rotate %102 by %c224_i32_34 dim 1 : vector<1x256xi32>, i32 -> vector<1x256xi32>
    %117 = arith.minsi %113, %116 : vector<1x256xi32>
    %c224_i32_35 = arith.constant 224 : i32
    %118 = tpu.dynamic_rotate %103 by %c224_i32_35 dim 1 : vector<1x256xi32>, i32 -> vector<1x256xi32>
    %119 = arith.maxsi %115, %118 : vector<1x256xi32>
    %c48_i32_36 = arith.constant 48 : i32
    %120 = tpu.dynamic_rotate %102 by %c48_i32_36 dim 1 : vector<1x256xi32>, i32 -> vector<1x256xi32>
    %121 = arith.minsi %117, %120 : vector<1x256xi32>
    %c48_i32_37 = arith.constant 48 : i32
    %122 = tpu.dynamic_rotate %103 by %c48_i32_37 dim 1 : vector<1x256xi32>, i32 -> vector<1x256xi32>
    %123 = arith.maxsi %119, %122 : vector<1x256xi32>
    %c208_i32_38 = arith.constant 208 : i32
    %124 = tpu.dynamic_rotate %102 by %c208_i32_38 dim 1 : vector<1x256xi32>, i32 -> vector<1x256xi32>
    %125 = arith.minsi %121, %124 : vector<1x256xi32>
    %c208_i32_39 = arith.constant 208 : i32
    %126 = tpu.dynamic_rotate %103 by %c208_i32_39 dim 1 : vector<1x256xi32>, i32 -> vector<1x256xi32>
    %127 = arith.maxsi %123, %126 : vector<1x256xi32>
    %128 = arith.cmpi ne, %125, %127 : vector<1x256xi32>
    %129 = arith.ori %41, %128 : vector<1x256xi1>
    %cst_40 = arith.constant 0.000000e+00 : f32
    %130 = vector.broadcast %cst_40 : f32 to vector<1x256xf32>
    %131 = arith.select %85, %11, %130 : vector<1x256xi1>, vector<1x256xf32>
    %132 = vector.shape_cast %131 : vector<1x256xf32> to vector<1x1x256xf32>
    %cst_41 = arith.constant dense<0.000000e+00> : vector<1xf32>
    %133 = vector.multi_reduction <add>, %132, %cst_41 [1, 2] : vector<1x1x256xf32> to vector<1xf32>
    %134 = vector.shape_cast %133 : vector<1xf32> to vector<1x1x1xf32>
    %135 = vector.extract %134[0, 0, 0] : f32 from vector<1x1x1xf32>
    %136 = arith.extui %129 : vector<1x256xi1> to vector<1x256xi32>
    %137 = arith.sitofp %136 : vector<1x256xi32> to vector<1x256xf32>
    %138 = vector.shape_cast %137 : vector<1x256xf32> to vector<1x1x256xf32>
    %cst_42 = arith.constant dense<0.000000e+00> : vector<1xf32>
    %139 = vector.multi_reduction <add>, %138, %cst_42 [1, 2] : vector<1x1x256xf32> to vector<1xf32>
    %140 = vector.shape_cast %139 : vector<1xf32> to vector<1x1x1xf32>
    %141 = vector.extract %140[0, 0, 0] : f32 from vector<1x1x1xf32>
    %142 = arith.andi %85, %129 : vector<1x256xi1>
    %143 = arith.cmpi eq, %38, %3 : vector<1x256xi32>
    %144 = arith.andi %142, %143 : vector<1x256xi1>
    %cst_43 = arith.constant 0.000000e+00 : f32
    %145 = vector.broadcast %cst_43 : f32 to vector<1x256xf32>
    %146 = arith.select %144, %11, %145 : vector<1x256xi1>, vector<1x256xf32>
    %147 = vector.shape_cast %146 : vector<1x256xf32> to vector<1x1x256xf32>
    %cst_44 = arith.constant dense<0.000000e+00> : vector<1xf32>
    %148 = vector.multi_reduction <add>, %147, %cst_44 [1, 2] : vector<1x1x256xf32> to vector<1xf32>
    %149 = vector.shape_cast %148 : vector<1xf32> to vector<1x1x1xf32>
    %150 = vector.extract %149[0, 0, 0] : f32 from vector<1x1x1xf32>
    %151 = tpu.iota {dimensions = array<i32: 2>} : vector<1x1x128xi32>
    %c0_i32 = arith.constant 0 : i32
    %152 = vector.broadcast %c0_i32 : i32 to vector<1x1x128xi32>
    %153 = arith.cmpi eq, %151, %152 : vector<1x1x128xi32>
    %cst_45 = arith.constant 0.000000e+00 : f32
    %154 = vector.broadcast %150 : f32 to vector<1x1x128xf32>
    %155 = vector.broadcast %cst_45 : f32 to vector<1x1x128xf32>
    %156 = arith.select %153, %154, %155 : vector<1x1x128xi1>, vector<1x1x128xf32>
    %c1_i32_46 = arith.constant 1 : i32
    %157 = vector.broadcast %c1_i32_46 : i32 to vector<1x1x128xi32>
    %158 = arith.cmpi eq, %151, %157 : vector<1x1x128xi32>
    %cst_47 = arith.constant 0.000000e+00 : f32
    %159 = vector.broadcast %135 : f32 to vector<1x1x128xf32>
    %160 = vector.broadcast %cst_47 : f32 to vector<1x1x128xf32>
    %161 = arith.select %158, %159, %160 : vector<1x1x128xi1>, vector<1x1x128xf32>
    %162 = arith.addf %156, %161 : vector<1x1x128xf32>
    %c2_i32_48 = arith.constant 2 : i32
    %163 = vector.broadcast %c2_i32_48 : i32 to vector<1x1x128xi32>
    %164 = arith.cmpi eq, %151, %163 : vector<1x1x128xi32>
    %cst_49 = arith.constant 0.000000e+00 : f32
    %165 = vector.broadcast %141 : f32 to vector<1x1x128xf32>
    %166 = vector.broadcast %cst_49 : f32 to vector<1x1x128xf32>
    %167 = arith.select %164, %165, %166 : vector<1x1x128xi1>, vector<1x1x128xf32>
    %168 = arith.addf %162, %167 : vector<1x1x128xf32>
    %c0_50 = arith.constant 0 : index
    %c0_51 = arith.constant 0 : index
    %c0_52 = arith.constant 0 : index
    %169 = vector.load %arg5[%c0_50, %c0_51, %c0_52] : memref<1x1x128xf32, #tpu.memory_space<vmem>>, vector<1x1x128xf32>
    tpu.vector_store %arg5[%c0_50, %c0_51, %c0_52], %168 {strides = array<i32>} : memref<1x1x128xf32, #tpu.memory_space<vmem>>, vector<1x1x128xf32>,
    return
  }
  func.func @transform_0(%arg0: i32) -> (i32, i32, i32) {
    %c0_i32 = arith.constant 0 : i32
    %c0_i32_0 = arith.constant 0 : i32
    %c0_i32_1 = arith.constant 0 : i32
    return %arg0, %c0_i32, %c0_i32_0 : i32, i32, i32
  }
  func.func @transform_1(%arg0: i32) -> (i32, i32, i32) {
    %c0_i32 = arith.constant 0 : i32
    %c0_i32_0 = arith.constant 0 : i32
    %c0_i32_1 = arith.constant 0 : i32
    return %arg0, %c0_i32, %c0_i32_0 : i32, i32, i32
  }
  func.func @transform_2(%arg0: i32) -> (i32, i32) {
    %c0_i32 = arith.constant 0 : i32
    %c0_i32_0 = arith.constant 0 : i32
    %c0_i32_1 = arith.constant 0 : i32
    return %c0_i32, %c0_i32_0 : i32, i32
  }
  func.func @transform_3(%arg0: i32) -> (i32, i32, i32) {
    %c0_i32 = arith.constant 0 : i32
    %c0_i32_0 = arith.constant 0 : i32
    %c0_i32_1 = arith.constant 0 : i32
    return %arg0, %c0_i32, %c0_i32_0 : i32, i32, i32
  }
  func.func @transform_4(%arg0: i32) -> (i32, i32, i32) {
    %c0_i32 = arith.constant 0 : i32
    %c0_i32_0 = arith.constant 0 : i32
    %c0_i32_1 = arith.constant 0 : i32
    return %arg0, %c0_i32, %c0_i32_0 : i32, i32, i32
  }
}

</mosaic_0001>

<llo_original>
// kernel: tpu_custom_call.1
$region0: #{tpu_custom_call.1}
  #allocation0 [shape = 'u32[]', space=smem, size = 0x4, offset = 0x4, fixed_abs, tag = 'smem constant byte address 0x4 - core index']
  #allocation1 [shape = 'u32[144,128]{1,0:T(1,128)}', space=vmem, size = 0x12000, scoped, tag = 'internal scratch']
  %s0 = inlined_call_operand.hbm [shape: f32[2,4,256], index: 0, kind: input, shape index: {}]
  %s1 = inlined_call_operand.hbm [shape: s32[2,1,256], index: 1, kind: input, shape index: {}]
  %s2 = inlined_call_operand.vmem [shape: f32[1,256], index: 2, kind: input, shape index: {}]
  %s3 = inlined_call_operand.hbm [shape: f32[2,4,256], index: 3, kind: output, shape index: {0}]
  %s4 = inlined_call_operand.hbm [shape: f32[2,1,128], index: 4, kind: output, shape index: {1}]
  %5 = xla_tuple %s3, %s4
  %s6 = sld [smem:[#allocation0]]
  $region61: #{tpu_custom_call.1} parent=0
    _
  %s8 = ssub.s32 1, %s6
  %s9 = scalar_select 0, %s8, %s6
  $region1: #{tpu_custom_call.1} parent=0
    #allocation2 [shape = 'u8[8192]{0}', space=vmem, size = 0x2000, scoped, tag = 'input window, operand 0']
    #allocation3 [shape = 's32[2]{0}', space=sflag, size = 0x8, scoped, tag = 'scoped memory for tpu_custom_call.1']
    #allocation4 [shape = 's32[2]{0}', space=sflag, size = 0x8, scoped, tag = 'scoped memory for tpu_custom_call.1']
    #allocation5 [shape = 'u8[2048]{0}', space=vmem, size = 0x800, scoped, tag = 'input window, operand 1']
    #allocation6 [shape = 's32[2]{0}', space=sflag, size = 0x8, scoped, tag = 'scoped memory for tpu_custom_call.1']
    #allocation7 [shape = 'u8[8192]{0}', space=vmem, size = 0x2000, scoped, tag = 'output window, operand 0']
    #allocation8 [shape = 'u8[1024]{0}', space=vmem, size = 0x400, scoped, tag = 'output window, operand 1']
    #allocation9 [shape = 's32[2]{0}', space=sflag, size = 0x8, scoped, tag = 'scoped memory for tpu_custom_call.1']
    %10 = vsyncpa [#allocation3], 0
    %s11 = scalar_lea.sflag [#allocation3], 1
    %12 = vsyncpa %s11, 0
    %13 = vsyncpa [#allocation6], 0
    %s14 = scalar_lea.sflag [#allocation6], 1
    %15 = vsyncpa %s14, 0
    %16 = vsyncpa [#allocation4], 0
    %s17 = scalar_lea.sflag [#allocation4], 1
    %18 = vsyncpa %s17, 0
    %19 = vsyncpa [#allocation9], 0
    %s20 = scalar_lea.sflag [#allocation9], 1
    %21 = vsyncpa %s20, 0
    loop: start=0, step=1, limit=4
    $region2: #{tpu_custom_call.1} parent=1 // loop_pre_header
      _
    $region3: #{tpu_custom_call.1} parent=1 // loop_header
      %s23 = sphi 0, %s27
      %p24 = scmp.ge.s32.totalorder %s23, 4
      %s33 = sphi 0, %s35
      %s36 = sphi 0, %s33
      %s37 = sphi 0, %s36
      %s53 = sphi 0, %s37
      %s59 = sphi 0, %s61
      %s62 = sphi 0, %s59
      %s63 = sphi 0, %s62
      %s79 = sphi 0, %s63
      %s83 = sphi 0, %s83
      %s85 = sphi 0, %s83
      %s86 = sphi 0, %s85
      %s100 = sphi 0, %s86
      %s106 = sphi 0, %s108
      %s109 = sphi 0, %s106
      %s110 = sphi 0, %s109
      %s126 = sphi 0, %s110
      %s132 = sphi 0, %s134
      %s135 = sphi 0, %s132
      %s136 = sphi 0, %s135
      %s152 = sphi 0, %s136
    $region4: #{tpu_custom_call.1} parent=1 // loop_header_branch
      %26 = sbr.rel (%p24) target = $region8
    $region5: #{tpu_custom_call.1} parent=1 // loop_body
      %s28 = ssub.s32 %s23, 1
      %s29 = ssub.s32 %s23, 2
      %s30 = sadd.s32 %s23, 1
      %s31 = ssub.s32 %s23, %s30
      %p32 = scmp.eq.s32.totalorder %s31, 0
      %s34 = sadd.s32 %s33, 1
      %s35 = scalar_select %p32, %s33, %s34
      %p38 = pneg %p32
      %p39 = scmp.eq.s32.totalorder %s23, 1
      %p40 = por %p38, %p39
      %p41 = scmp.ne.s32.totalorder %s33, %s36
      %p42 = scmp.eq.s32.totalorder %s23, 0
      %p43 = por %p41, %p42
      %p44 = scmp.ne.s32.totalorder %s33, %s36
      %p45 = scmp.eq.s32.totalorder %s28, 1
      %p46 = por %p44, %p45
      %p47 = scmp.ne.s32.totalorder %s36, %s37
      %p48 = scmp.eq.s32.totalorder %s28, 0
      %p49 = por %p47, %p48
      %p50 = scmp.ne.s32.totalorder %s36, %s37
      %p51 = scmp.eq.s32.totalorder %s29, 1
      %p52 = por %p50, %p51
      %p54 = scmp.ne.s32.totalorder %s37, %s53
      %p55 = scmp.eq.s32.totalorder %s29, 0
      %p56 = por %p54, %p55
      %s57 = ssub.s32 %s23, %s30
      %p58 = scmp.eq.s32.totalorder %s57, 0
      %s60 = sadd.s32 %s59, 1
      %s61 = scalar_select %p58, %s59, %s60
      %p64 = pneg %p58
      %p65 = scmp.eq.s32.totalorder %s23, 1
      %p66 = por %p64, %p65
      %p67 = scmp.ne.s32.totalorder %s59, %s62
      %p68 = scmp.eq.s32.totalorder %s23, 0
      %p69 = por %p67, %p68
      %p70 = scmp.ne.s32.totalorder %s59, %s62
      %p71 = scmp.eq.s32.totalorder %s28, 1
      %p72 = por %p70, %p71
      %p73 = scmp.ne.s32.totalorder %s62, %s63
      %p74 = scmp.eq.s32.totalorder %s28, 0
      %p75 = por %p73, %p74
      %p76 = scmp.ne.s32.totalorder %s62, %s63
      %p77 = scmp.eq.s32.totalorder %s29, 1
      %p78 = por %p76, %p77
      %p80 = scmp.ne.s32.totalorder %s63, %s79
      %p81 = scmp.eq.s32.totalorder %s29, 0
      %p82 = por %p80, %p81
      %s84 = sadd.s32 %s83, 1
      %p87 = scmp.eq.s32.totalorder %s23, 1
      %p88 = scmp.ne.s32.totalorder %s83, %s85
      %p89 = scmp.eq.s32.totalorder %s23, 0
      %p90 = por %p88, %p89
      %p91 = scmp.ne.s32.totalorder %s83, %s85
      %p92 = scmp.eq.s32.totalorder %s28, 1
      %p93 = por %p91, %p92
      %p94 = scmp.ne.s32.totalorder %s85, %s86
      %p95 = scmp.eq.s32.totalorder %s28, 0
      %p96 = por %p94, %p95
      %p97 = scmp.ne.s32.totalorder %s85, %s86
      %p98 = scmp.eq.s32.totalorder %s29, 1
      %p99 = por %p97, %p98
      %p101 = scmp.ne.s32.totalorder %s86, %s100
      %p102 = scmp.eq.s32.totalorder %s29, 0
      %p103 = por %p101, %p102
      %s104 = ssub.s32 %s23, %s30
      %p105 = scmp.eq.s32.totalorder %s104, 0
      %s107 = sadd.s32 %s106, 1
      %s108 = scalar_select %p105, %s106, %s107
      %p111 = pneg %p105
      %p112 = scmp.eq.s32.totalorder %s23, 1
      %p113 = por %p111, %p112
      %p114 = scmp.ne.s32.totalorder %s106, %s109
      %p115 = scmp.eq.s32.totalorder %s23, 0
      %p116 = por %p114, %p115
      %p117 = scmp.ne.s32.totalorder %s106, %s109
      %p118 = scmp.eq.s32.totalorder %s28, 1
      %p119 = por %p117, %p118
      %p120 = scmp.ne.s32.totalorder %s109, %s110
      %p121 = scmp.eq.s32.totalorder %s28, 0
      %p122 = por %p120, %p121
      %p123 = scmp.ne.s32.totalorder %s109, %s110
      %p124 = scmp.eq.s32.totalorder %s29, 1
      %p125 = por %p123, %p124
      %p127 = scmp.ne.s32.totalorder %s110, %s126
      %p128 = scmp.eq.s32.totalorder %s29, 0
      %p129 = por %p127, %p128
      %s130 = ssub.s32 %s23, %s30
      %p131 = scmp.eq.s32.totalorder %s130, 0
      %s133 = sadd.s32 %s132, 1
      %s134 = scalar_select %p131, %s132, %s133
      %p137 = pneg %p131
      %p138 = scmp.eq.s32.totalorder %s23, 1
      %p139 = por %p137, %p138
      %p140 = scmp.ne.s32.totalorder %s132, %s135
      %p141 = scmp.eq.s32.totalorder %s23, 0
      %p142 = por %p140, %p141
      %p143 = scmp.ne.s32.totalorder %s132, %s135
      %p144 = scmp.eq.s32.totalorder %s28, 1
      %p145 = por %p143, %p144
      %p146 = scmp.ne.s32.totalorder %s135, %s136
      %p147 = scmp.eq.s32.totalorder %s28, 0
      %p148 = por %p146, %p147
      %p149 = scmp.ne.s32.totalorder %s135, %s136
      %p150 = scmp.eq.s32.totalorder %s29, 1
      %p151 = por %p149, %p150
      %p153 = scmp.ne.s32.totalorder %s136, %s152
      %p154 = scmp.eq.s32.totalorder %s29, 0
      %p155 = por %p153, %p154
      %p156 = scmp.le.s32.totalorder 1, %s23
      %p157 = scmp.lt.s32.totalorder %s23, 3
      %p158 = pnand %p156, %p157
      %p159 = pneg %p158
      // Predicated region
      $region9: #{tpu_custom_call.1} parent=5 // pred_check
        _
      $region10: #{tpu_custom_call.1} parent=5 // pred_check_branch
        %161 = sbr.rel (%p158) target = $region12
      $region11: #{tpu_custom_call.1} parent=5 // pred_region
        %s162 = ssub.s32 %s23, 1
        // Predicated region
        $region13: #{tpu_custom_call.1} parent=11 // pred_check
          %p163 = pneg %p96
        $region14: #{tpu_custom_call.1} parent=11 // pred_check_branch
          %165 = sbr.rel (%p163) target = $region16
        $region15: #{tpu_custom_call.1} parent=11 // pred_region
          _
        $region16: #{tpu_custom_call.1} parent=11 // pred_fallthru
          _
      $region12: #{tpu_custom_call.1} parent=5 // pred_fallthru
        _
      %p166 = scmp.lt.s32.totalorder %s23, 2
      // Predicated region
      $region17: #{tpu_custom_call.1} parent=5 // pred_check
        %p167 = pneg %p166
      $region18: #{tpu_custom_call.1} parent=5 // pred_check_branch
        %169 = sbr.rel (%p167) target = $region20
      $region19: #{tpu_custom_call.1} parent=5 // pred_region
        // Predicated region
        $region21: #{tpu_custom_call.1} parent=19 // pred_check
          %p170 = pneg %p43
        $region22: #{tpu_custom_call.1} parent=19 // pred_check_branch
          %172 = sbr.rel (%p170) target = $region24
        $region23: #{tpu_custom_call.1} parent=19 // pred_region
          %s173 = sand.u32 %s33, 1
          %s174 = scalar_lea.sflag [#allocation3], %s173
          %s175 = sand.u32 %s33, 1
          %s176 = smul.addr %s175, 8
          %s177 = scalar_lea.vmem [#allocation2], %s176
          %s179 = ssub.s32 128, 128
          %180 = vsyncadd %s174, %s179
          %s181 = smul.addr %s23, 2
          %s182 = smul.addr %s181, 64
          %s183 = scalar_lea.hbm %s0, %s182
          %s185 = sshll.u32 %s177, 4
          %s186 = int_to_ptr.vmem [resolvable:$true] %s185
          %188 = dma.hbm_to_vmem [thread:$0]  %s183, 128, %s186, %s174
        $region24: #{tpu_custom_call.1} parent=19 // pred_fallthru
          _
        // Predicated region
        $region25: #{tpu_custom_call.1} parent=19 // pred_check
          %p189 = pneg %p69
        $region26: #{tpu_custom_call.1} parent=19 // pred_check_branch
          %191 = sbr.rel (%p189) target = $region28
        $region27: #{tpu_custom_call.1} parent=19 // pred_region
          %s192 = sand.u32 %s59, 1
          %s193 = scalar_lea.sflag [#allocation6], %s192
          %s194 = sand.u32 %s59, 1
          %s195 = smul.addr %s194, 2
          %s196 = scalar_lea.vmem [#allocation5], %s195
          %s198 = ssub.s32 32, 32
          %199 = vsyncadd %s193, %s198
          %s200 = smul.addr %s23, 2
          %s201 = smul.addr %s200, 16
          %s202 = scalar_lea.hbm %s1, %s201
          %s204 = sshll.u32 %s196, 4
          %s205 = int_to_ptr.vmem [resolvable:$true] %s204
          %207 = dma.hbm_to_vmem [thread:$0]  %s202, 32, %s205, %s193
        $region28: #{tpu_custom_call.1} parent=19 // pred_fallthru
          _
      $region20: #{tpu_custom_call.1} parent=5 // pred_fallthru
        _
      %p208 = scmp.le.s32.totalorder 1, %s23
      %p209 = scmp.lt.s32.totalorder %s23, 3
      %p210 = pnand %p208, %p209
      %p211 = pneg %p210
      // Predicated region
      $region29: #{tpu_custom_call.1} parent=5 // pred_check
        _
      $region30: #{tpu_custom_call.1} parent=5 // pred_check_branch
        %213 = sbr.rel (%p210) target = $region32
      $region31: #{tpu_custom_call.1} parent=5 // pred_region
        %s214 = ssub.s32 %s23, 1
        %s215 = sand.u32 %s36, 1
        %s216 = scalar_lea.sflag [#allocation3], %s215
        %s217 = sand.u32 %s36, 1
        %s218 = smul.addr %s217, 8
        %s219 = scalar_lea.vmem [#allocation2], %s218
        // Predicated region
        $region33: #{tpu_custom_call.1} parent=31 // pred_check
          %p220 = pneg %p49
        $region34: #{tpu_custom_call.1} parent=31 // pred_check_branch
          %222 = sbr.rel (%p220) target = $region36
        $region35: #{tpu_custom_call.1} parent=31 // pred_region
          %223 = dma.done %s216, 128
        $region36: #{tpu_custom_call.1} parent=31 // pred_fallthru
          _
        %s224 = sand.u32 %s62, 1
        %s225 = scalar_lea.sflag [#allocation6], %s224
        %s226 = sand.u32 %s62, 1
        %s227 = smul.addr %s226, 2
        %s228 = scalar_lea.vmem [#allocation5], %s227
        // Predicated region
        $region37: #{tpu_custom_call.1} parent=31 // pred_check
          %p229 = pneg %p75
        $region38: #{tpu_custom_call.1} parent=31 // pred_check_branch
          %231 = sbr.rel (%p229) target = $region40
        $region39: #{tpu_custom_call.1} parent=31 // pred_region
          %232 = dma.done %s225, 32
        $region40: #{tpu_custom_call.1} parent=31 // pred_fallthru
          _
        %s233 = sand.u32 %s36, 1
        %s234 = scalar_lea.sflag [#allocation3], %s233
        %s235 = sand.u32 %s36, 1
        %s236 = smul.addr %s235, 8
        %s237 = scalar_lea.vmem [#allocation2], %s236
        %p238 = pneg %p49
        %p239 = pneg %p46
        %s240 = sand.u32 %s62, 1
        %s241 = scalar_lea.sflag [#allocation6], %s240
        %s242 = sand.u32 %s62, 1
        %s243 = smul.addr %s242, 2
        %s244 = scalar_lea.vmem [#allocation5], %s243
        %p245 = pneg %p75
        %p246 = pneg %p72
        %p247 = pneg %p96
        %p248 = pneg %p93
        %p249 = pneg %p122
        %p250 = pneg %p119
        %s251 = sand.u32 %s109, 1
        %s252 = scalar_lea.sflag [#allocation4], %s251
        %s253 = sand.u32 %s109, 1
        %s254 = smul.addr %s253, 8
        %s255 = scalar_lea.vmem [#allocation7], %s254
        %p256 = pneg %p148
        %p257 = pneg %p145
        %s258 = sand.u32 %s135, 1
        %s259 = scalar_lea.sflag [#allocation9], %s258
        %s260 = sand.u32 %s135, 1
        %s261 = scalar_lea.vmem [#allocation8], %s260
        %v262 = vld [vmem:[%s219] sm:$0xff]
        %v263 = vld [vmem:[%s228] sm:$0x3]
        %v265 = vcombine.high %v262, %v262
        %vm267 = vcmask 1043456
        %v268 = vsel %vm267, %v262, -inf
        %v269 = vrot.slane %v268, 4
        %v270 = vmax.f32 %v268, %v269
        %v271 = vrot.slane %v270, 2
        %v272 = vmax.f32 %v270, %v271
        %v273 = vrot.slane %v272, 1
        %v274 = vmax.f32 %v272, %v273
        %v275 = vsel %vm267, %v265, -inf
        %v276 = vrot.slane %v275, 4
        %v277 = vmax.f32 %v275, %v276
        %v278 = vrot.slane %v277, 2
        %v279 = vmax.f32 %v277, %v278
        %v280 = vrot.slane %v279, 1
        %v281 = vmax.f32 %v279, %v280
        %v284 = vcombine.low %v274, %v281
        %v286 = vsub.f32 %v262, %v284
        %v287 = vmul.f32 %v286, 1.442695
        %v288 = vpow.pop %v287
        %v290 = vcombine.high %v288, %v288
        %v292 = vsel %vm267, %v288, 0.0
        %v293 = vrot.slane %v292, 4
        %v294 = vadd.f32 %v292, %v293
        %v295 = vrot.slane %v294, 2
        %v296 = vadd.f32 %v294, %v295
        %v297 = vrot.slane %v296, 1
        %v298 = vadd.f32 %v296, %v297
        %v299 = vsel %vm267, %v290, 0.0
        %v300 = vrot.slane %v299, 4
        %v301 = vadd.f32 %v299, %v300
        %v302 = vrot.slane %v301, 2
        %v303 = vadd.f32 %v301, %v302
        %v304 = vrot.slane %v303, 1
        %v305 = vadd.f32 %v303, %v304
        %v306 = vrcp.pop %v298
        %v307 = vrcp.pop %v305
        %v310 = vcombine.low %v306, %v307
        %v312 = vmul.f32 %v288, %v310
        %v313 = vlaneseq
        %v314 = vshrl.u32 %v313, 7
        %v315 = vlaneseq
        %v316 = vshrl.u32 %v315, 7
        %v317 = vsub.s32 0, %v316
        %v318 = vrot.slane %v263, %v317
        %v319 = vlaneseq
        %v320 = vshrl.u32 %v319, 7
        %v321 = vsub.s32 1, %v320
        %v322 = vrot.slane %v263, %v321
        %vm323 = vcmp.eq.s32.totalorder %v314, %v318
        %vm324 = vcmp.eq.s32.totalorder %v314, %v322
        %v325 = vsel %vm323, 1, 0
        %v326 = vsel %vm324, 1, 0
        %v327 = vcvt.s32.f32 %v325
        %v328 = vcvt.s32.f32 %v326
        %v331 = vcombine.low %v327, %v328
        %v333 = vmul.f32 %v312, %v331
        %v334 = vadd.f32 %v312, %v331
        %v335 = vsub.f32 %v334, %v333
        %v336 = vadd.f32 %v333, 1e-24
        %v337 = vadd.f32 %v335, 1e-24
        %v338 = vrcp.pop %v337
        %v339 = vmul.f32 %v336, %v338
        %v340 = vsub.f32 1.0, %v339
        %341 = vst [vmem:[%s255] sm:$0xff] %v340
        %vm342 = vcmp.eq.f32.partialorder %v262, %v284
        %v344 = vunpack.c.l.s4 839922192
        %v345 = vunpack.c.0.s8 %v344
        %v346 = vlaneseq
        %v347 = vshrl.u32 %v346, 7
        %v348 = vsub.s32 %v345, %v347
        %v349 = vrot.slane %v314, %v348
        %v350 = vsel %vm342, %v349, 4
        %v351 = vcombine.high %v350, %v350
        %v352 = vsel %vm267, %v350, 2147483647
        %v353 = vrot.slane %v352, 4
        %vm354 = vcmp.lt.s32.totalorder %v352, %v353
        %v355 = vsel %vm354, %v352, %v353
        %v356 = vrot.slane %v355, 2
        %vm357 = vcmp.lt.s32.totalorder %v355, %v356
        %v358 = vsel %vm357, %v355, %v356
        %v359 = vrot.slane %v358, 1
        %vm360 = vcmp.lt.s32.totalorder %v358, %v359
        %v361 = vsel %vm360, %v358, %v359
        %v362 = vsel %vm267, %v351, 2147483647
        %v363 = vrot.slane %v362, 4
        %vm364 = vcmp.lt.s32.totalorder %v362, %v363
        %v365 = vsel %vm364, %v362, %v363
        %v366 = vrot.slane %v365, 2
        %vm367 = vcmp.lt.s32.totalorder %v365, %v366
        %v368 = vsel %vm367, %v365, %v366
        %v369 = vrot.slane %v368, 1
        %vm370 = vcmp.lt.s32.totalorder %v368, %v369
        %v371 = vsel %vm370, %v368, %v369
        %v372 = vld [vmem:[%s2] sm:$0x3]
        %vm373 = vcmp.gt.f32.partialorder %v372, 0.5
        %374 = vrot.lane.b32.xlu0 %v361, 1
        %v375 = vpop.permute.xlu0 %374
        %376 = vrot.lane.b32.xlu0 %v371, 1
        %v377 = vpop.permute.xlu0 %376
        %v378 = vlaneseq
        %v379 = vand.u32 %v378, 127
        %vm380 = vcmp.lt.s32.totalorder %v379, 1
        %v381 = vsel %vm380, %v375, %v377
        %v382 = vsel %vm380, %v377, %v375
        %vm383 = vcmp.lt.s32.totalorder %v361, %v382
        %v384 = vsel %vm383, %v361, %v382
        %vm385 = vcmp.lt.s32.totalorder %v371, %v381
        %v386 = vsel %vm385, %v371, %v381
        %vm387 = vcmp.gt.s32.totalorder %v361, %v382
        %v388 = vsel %vm387, %v361, %v382
        %vm389 = vcmp.gt.s32.totalorder %v371, %v381
        %v390 = vsel %vm389, %v371, %v381
        %391 = vrot.lane.b32.xlu0 %v361, 127
        %v392 = vpop.permute.xlu0 %391
        %393 = vrot.lane.b32.xlu0 %v371, 127
        %v394 = vpop.permute.xlu0 %393
        %vm395 = vcmp.lt.s32.totalorder %v379, 127
        %v396 = vsel %vm395, %v392, %v394
        %v397 = vsel %vm395, %v394, %v392
        %vm398 = vcmp.lt.s32.totalorder %v384, %v396
        %v399 = vsel %vm398, %v384, %v396
        %vm400 = vcmp.lt.s32.totalorder %v386, %v397
        %v401 = vsel %vm400, %v386, %v397
        %vm402 = vcmp.gt.s32.totalorder %v388, %v396
        %v403 = vsel %vm402, %v388, %v396
        %vm404 = vcmp.gt.s32.totalorder %v390, %v397
        %v405 = vsel %vm404, %v390, %v397
        %406 = vrot.lane.b32.xlu0 %v361, 2
        %v407 = vpop.permute.xlu0 %406
        %408 = vrot.lane.b32.xlu0 %v371, 2
        %v409 = vpop.permute.xlu0 %408
        %vm410 = vcmp.lt.s32.totalorder %v379, 2
        %v411 = vsel %vm410, %v407, %v409
        %v412 = vsel %vm410, %v409, %v407
        %vm413 = vcmp.lt.s32.totalorder %v399, %v412
        %v414 = vsel %vm413, %v399, %v412
        %vm415 = vcmp.lt.s32.totalorder %v401, %v411
        %v416 = vsel %vm415, %v401, %v411
        %vm417 = vcmp.gt.s32.totalorder %v403, %v412
        %v418 = vsel %vm417, %v403, %v412
        %vm419 = vcmp.gt.s32.totalorder %v405, %v411
        %v420 = vsel %vm419, %v405, %v411
        %421 = vrot.lane.b32.xlu0 %v361, 126
        %v422 = vpop.permute.xlu0 %421
        %423 = vrot.lane.b32.xlu0 %v371, 126
        %v424 = vpop.permute.xlu0 %423
        %vm425 = vcmp.lt.s32.totalorder %v379, 126
        %v426 = vsel %vm425, %v422, %v424
        %v427 = vsel %vm425, %v424, %v422
        %vm428 = vcmp.lt.s32.totalorder %v414, %v426
        %v429 = vsel %vm428, %v414, %v426
        %vm430 = vcmp.lt.s32.totalorder %v416, %v427
        %v431 = vsel %vm430, %v416, %v427
        %vm432 = vcmp.gt.s32.totalorder %v418, %v426
        %v433 = vsel %vm432, %v418, %v426
        %vm434 = vcmp.gt.s32.totalorder %v420, %v427
        %v435 = vsel %vm434, %v420, %v427
        %436 = vrot.lane.b32.xlu0 %v361, 3
        %v437 = vpop.permute.xlu0 %436
        %438 = vrot.lane.b32.xlu0 %v371, 3
        %v439 = vpop.permute.xlu0 %438
        %vm440 = vcmp.lt.s32.totalorder %v379, 3
        %v441 = vsel %vm440, %v437, %v439
        %v442 = vsel %vm440, %v439, %v437
        %vm443 = vcmp.lt.s32.totalorder %v429, %v442
        %v444 = vsel %vm443, %v429, %v442
        %vm445 = vcmp.lt.s32.totalorder %v431, %v441
        %v446 = vsel %vm445, %v431, %v441
        %vm447 = vcmp.gt.s32.totalorder %v433, %v442
        %v448 = vsel %vm447, %v433, %v442
        %vm449 = vcmp.gt.s32.totalorder %v435, %v441
        %v450 = vsel %vm449, %v435, %v441
        %451 = vrot.lane.b32.xlu0 %v361, 125
        %v452 = vpop.permute.xlu0 %451
        %453 = vrot.lane.b32.xlu0 %v371, 125
        %v454 = vpop.permute.xlu0 %453
        %vm455 = vcmp.lt.s32.totalorder %v379, 125
        %v456 = vsel %vm455, %v452, %v454
        %v457 = vsel %vm455, %v454, %v452
        %vm458 = vcmp.lt.s32.totalorder %v444, %v456
        %v459 = vsel %vm458, %v444, %v456
        %vm460 = vcmp.lt.s32.totalorder %v446, %v457
        %v461 = vsel %vm460, %v446, %v457
        %vm462 = vcmp.gt.s32.totalorder %v448, %v456
        %v463 = vsel %vm462, %v448, %v456
        %vm464 = vcmp.gt.s32.totalorder %v450, %v457
        %v465 = vsel %vm464, %v450, %v457
        %466 = vrot.lane.b32.xlu0 %v459, 16
        %v467 = vpop.permute.xlu0 %466
        %468 = vrot.lane.b32.xlu0 %v461, 16
        %v469 = vpop.permute.xlu0 %468
        %vm470 = vcmp.lt.s32.totalorder %v379, 16
        %v471 = vsel %vm470, %v467, %v469
        %v472 = vsel %vm470, %v469, %v467
        %vm473 = vcmp.lt.s32.totalorder %v459, %v472
        %v474 = vsel %vm473, %v459, %v472
        %vm475 = vcmp.lt.s32.totalorder %v461, %v471
        %v476 = vsel %vm475, %v461, %v471
        %477 = vrot.lane.b32.xlu0 %v463, 16
        %v478 = vpop.permute.xlu0 %477
        %479 = vrot.lane.b32.xlu0 %v465, 16
        %v480 = vpop.permute.xlu0 %479
        %v481 = vsel %vm470, %v478, %v480
        %v482 = vsel %vm470, %v480, %v478
        %vm483 = vcmp.gt.s32.totalorder %v463, %v482
        %v484 = vsel %vm483, %v463, %v482
        %vm485 = vcmp.gt.s32.totalorder %v465, %v481
        %v486 = vsel %vm485, %v465, %v481
        %487 = vrot.lane.b32.xlu0 %v459, 112
        %v488 = vpop.permute.xlu0 %487
        %489 = vrot.lane.b32.xlu0 %v461, 112
        %v490 = vpop.permute.xlu0 %489
        %vm491 = vcmp.lt.s32.totalorder %v379, 112
        %v492 = vsel %vm491, %v488, %v490
        %v493 = vsel %vm491, %v490, %v488
        %vm494 = vcmp.lt.s32.totalorder %v474, %v492
        %v495 = vsel %vm494, %v474, %v492
        %vm496 = vcmp.lt.s32.totalorder %v476, %v493
        %v497 = vsel %vm496, %v476, %v493
        %498 = vrot.lane.b32.xlu0 %v463, 112
        %v499 = vpop.permute.xlu0 %498
        %500 = vrot.lane.b32.xlu0 %v465, 112
        %v501 = vpop.permute.xlu0 %500
        %v502 = vsel %vm491, %v499, %v501
        %v503 = vsel %vm491, %v501, %v499
        %vm504 = vcmp.gt.s32.totalorder %v484, %v502
        %v505 = vsel %vm504, %v484, %v502
        %vm506 = vcmp.gt.s32.totalorder %v486, %v503
        %v507 = vsel %vm506, %v486, %v503
        %508 = vrot.lane.b32.xlu0 %v459, 32
        %v509 = vpop.permute.xlu0 %508
        %510 = vrot.lane.b32.xlu0 %v461, 32
        %v511 = vpop.permute.xlu0 %510
        %vm512 = vcmp.lt.s32.totalorder %v379, 32
        %v513 = vsel %vm512, %v509, %v511
        %v514 = vsel %vm512, %v511, %v509
        %vm515 = vcmp.lt.s32.totalorder %v495, %v514
        %v516 = vsel %vm515, %v495, %v514
        %vm517 = vcmp.lt.s32.totalorder %v497, %v513
        %v518 = vsel %vm517, %v497, %v513
        %519 = vrot.lane.b32.xlu0 %v463, 32
        %v520 = vpop.permute.xlu0 %519
        %521 = vrot.lane.b32.xlu0 %v465, 32
        %v522 = vpop.permute.xlu0 %521
        %v523 = vsel %vm512, %v520, %v522
        %v524 = vsel %vm512, %v522, %v520
        %vm525 = vcmp.gt.s32.totalorder %v505, %v524
        %v526 = vsel %vm525, %v505, %v524
        %vm527 = vcmp.gt.s32.totalorder %v507, %v523
        %v528 = vsel %vm527, %v507, %v523
        %529 = vrot.lane.b32.xlu0 %v459, 96
        %v530 = vpop.permute.xlu0 %529
        %531 = vrot.lane.b32.xlu0 %v461, 96
        %v532 = vpop.permute.xlu0 %531
        %vm533 = vcmp.lt.s32.totalorder %v379, 96
        %v534 = vsel %vm533, %v530, %v532
        %v535 = vsel %vm533, %v532, %v530
        %vm536 = vcmp.lt.s32.totalorder %v516, %v534
        %v537 = vsel %vm536, %v516, %v534
        %vm538 = vcmp.lt.s32.totalorder %v518, %v535
        %v539 = vsel %vm538, %v518, %v535
        %540 = vrot.lane.b32.xlu0 %v463, 96
        %v541 = vpop.permute.xlu0 %540
        %542 = vrot.lane.b32.xlu0 %v465, 96
        %v543 = vpop.permute.xlu0 %542
        %v544 = vsel %vm533, %v541, %v543
        %v545 = vsel %vm533, %v543, %v541
        %vm546 = vcmp.gt.s32.totalorder %v526, %v544
        %v547 = vsel %vm546, %v526, %v544
        %vm548 = vcmp.gt.s32.totalorder %v528, %v545
        %v549 = vsel %vm548, %v528, %v545
        %550 = vrot.lane.b32.xlu0 %v459, 48
        %v551 = vpop.permute.xlu0 %550
        %552 = vrot.lane.b32.xlu0 %v461, 48
        %v553 = vpop.permute.xlu0 %552
        %vm554 = vcmp.lt.s32.totalorder %v379, 48
        %v555 = vsel %vm554, %v551, %v553
        %v556 = vsel %vm554, %v553, %v551
        %vm557 = vcmp.lt.s32.totalorder %v537, %v556
        %v558 = vsel %vm557, %v537, %v556
        %vm559 = vcmp.lt.s32.totalorder %v539, %v555
        %v560 = vsel %vm559, %v539, %v555
        %561 = vrot.lane.b32.xlu0 %v463, 48
        %v562 = vpop.permute.xlu0 %561
        %563 = vrot.lane.b32.xlu0 %v465, 48
        %v564 = vpop.permute.xlu0 %563
        %v565 = vsel %vm554, %v562, %v564
        %v566 = vsel %vm554, %v564, %v562
        %vm567 = vcmp.gt.s32.totalorder %v547, %v566
        %v568 = vsel %vm567, %v547, %v566
        %vm569 = vcmp.gt.s32.totalorder %v549, %v565
        %v570 = vsel %vm569, %v549, %v565
        %571 = vrot.lane.b32.xlu0 %v459, 80
        %v572 = vpop.permute.xlu0 %571
        %573 = vrot.lane.b32.xlu0 %v461, 80
        %v574 = vpop.permute.xlu0 %573
        %vm575 = vcmp.lt.s32.totalorder %v379, 80
        %v576 = vsel %vm575, %v572, %v574
        %v577 = vsel %vm575, %v574, %v572
        %vm578 = vcmp.lt.s32.totalorder %v558, %v576
        %v579 = vsel %vm578, %v558, %v576
        %vm580 = vcmp.lt.s32.totalorder %v560, %v577
        %v581 = vsel %vm580, %v560, %v577
        %582 = vrot.lane.b32.xlu0 %v463, 80
        %v583 = vpop.permute.xlu0 %582
        %584 = vrot.lane.b32.xlu0 %v465, 80
        %v585 = vpop.permute.xlu0 %584
        %v586 = vsel %vm575, %v583, %v585
        %v587 = vsel %vm575, %v585, %v583
        %vm588 = vcmp.gt.s32.totalorder %v568, %v586
        %v589 = vsel %vm588, %v568, %v586
        %vm590 = vcmp.gt.s32.totalorder %v570, %v587
        %v591 = vsel %vm590, %v570, %v587
        %vm592 = vcmp.ne.s32.totalorder %v579, %v589
        %vm593 = vcmp.ne.s32.totalorder %v581, %v591
        %v594 = vsel %vm592, 1, 0
        %v595 = vsel %vm593, 1, 0
        %v596 = vcombine.low %v594, %v595
        %v598 = vunpack.c.l.s4 1966171168
        %v599 = vunpack.c.0.s8 %v598
        %v600 = vlaneseq
        %v601 = vshrl.u32 %v600, 7
        %v602 = vsub.s32 %v599, %v601
        %v603 = vrot.slane %v596, %v602
        %v605 = vunpack.c.l.s4 1966171168
        %v606 = vunpack.c.0.s8 %v605
        %v607 = vlaneseq
        %v608 = vshrl.u32 %v607, 7
        %v609 = vsub.s32 %v606, %v608
        %v610 = vrot.slane %v603, %v609
        %vm611 = vcmp.ne.s32.totalorder %v610, 0
        %vm612 = vmor %vm373, %vm611
        %613 = vrot.lane.b32.xlu0 %v318, 1
        %v614 = vpop.permute.xlu0 %613
        %615 = vrot.lane.b32.xlu0 %v322, 1
        %v616 = vpop.permute.xlu0 %615
        %v617 = vsel %vm380, %v614, %v616
        %v618 = vsel %vm380, %v616, %v614
        %v619 = vcombine.low %v618, %v617
        %v621 = vunpack.c.l.s4 1966171168
        %v622 = vunpack.c.0.s8 %v621
        %v623 = vlaneseq
        %v624 = vshrl.u32 %v623, 7
        %v625 = vsub.s32 %v622, %v624
        %v626 = vrot.slane %v619, %v625
        %v628 = vunpack.c.l.s4 1966171168
        %v629 = vunpack.c.0.s8 %v628
        %v630 = vlaneseq
        %v631 = vshrl.u32 %v630, 7
        %v632 = vsub.s32 %v629, %v631
        %v633 = vrot.slane %v626, %v632
        %vm634 = vcmp.lt.s32.totalorder %v263, %v633
        %v635 = vsel %vm634, %v263, %v633
        %vm636 = vcmp.gt.s32.totalorder %v263, %v633
        %v637 = vsel %vm636, %v263, %v633
        %638 = vrot.lane.b32.xlu0 %v318, 127
        %v639 = vpop.permute.xlu0 %638
        %640 = vrot.lane.b32.xlu0 %v322, 127
        %v641 = vpop.permute.xlu0 %640
        %v642 = vsel %vm395, %v639, %v641
        %v643 = vsel %vm395, %v641, %v639
        %v644 = vcombine.low %v642, %v643
        %v646 = vunpack.c.l.s4 1966171168
        %v647 = vunpack.c.0.s8 %v646
        %v648 = vlaneseq
        %v649 = vshrl.u32 %v648, 7
        %v650 = vsub.s32 %v647, %v649
        %v651 = vrot.slane %v644, %v650
        %v653 = vunpack.c.l.s4 1966171168
        %v654 = vunpack.c.0.s8 %v653
        %v655 = vlaneseq
        %v656 = vshrl.u32 %v655, 7
        %v657 = vsub.s32 %v654, %v656
        %v658 = vrot.slane %v651, %v657
        %vm659 = vcmp.lt.s32.totalorder %v635, %v658
        %v660 = vsel %vm659, %v635, %v658
        %vm661 = vcmp.gt.s32.totalorder %v637, %v658
        %v662 = vsel %vm661, %v637, %v658
        %663 = vrot.lane.b32.xlu0 %v318, 2
        %v664 = vpop.permute.xlu0 %663
        %665 = vrot.lane.b32.xlu0 %v322, 2
        %v666 = vpop.permute.xlu0 %665
        %v667 = vsel %vm410, %v664, %v666
        %v668 = vsel %vm410, %v666, %v664
        %v669 = vcombine.low %v668, %v667
        %v671 = vunpack.c.l.s4 1966171168
        %v672 = vunpack.c.0.s8 %v671
        %v673 = vlaneseq
        %v674 = vshrl.u32 %v673, 7
        %v675 = vsub.s32 %v672, %v674
        %v676 = vrot.slane %v669, %v675
        %v678 = vunpack.c.l.s4 1966171168
        %v679 = vunpack.c.0.s8 %v678
        %v680 = vlaneseq
        %v681 = vshrl.u32 %v680, 7
        %v682 = vsub.s32 %v679, %v681
        %v683 = vrot.slane %v676, %v682
        %vm684 = vcmp.lt.s32.totalorder %v660, %v683
        %v685 = vsel %vm684, %v660, %v683
        %vm686 = vcmp.gt.s32.totalorder %v662, %v683
        %v687 = vsel %vm686, %v662, %v683
        %688 = vrot.lane.b32.xlu0 %v318, 126
        %v689 = vpop.permute.xlu0 %688
        %690 = vrot.lane.b32.xlu0 %v322, 126
        %v691 = vpop.permute.xlu0 %690
        %v692 = vsel %vm425, %v689, %v691
        %v693 = vsel %vm425, %v691, %v689
        %v694 = vcombine.low %v692, %v693
        %v696 = vunpack.c.l.s4 1966171168
        %v697 = vunpack.c.0.s8 %v696
        %v698 = vlaneseq
        %v699 = vshrl.u32 %v698, 7
        %v700 = vsub.s32 %v697, %v699
        %v701 = vrot.slane %v694, %v700
        %v703 = vunpack.c.l.s4 1966171168
        %v704 = vunpack.c.0.s8 %v703
        %v705 = vlaneseq
        %v706 = vshrl.u32 %v705, 7
        %v707 = vsub.s32 %v704, %v706
        %v708 = vrot.slane %v701, %v707
        %vm709 = vcmp.lt.s32.totalorder %v685, %v708
        %v710 = vsel %vm709, %v685, %v708
        %vm711 = vcmp.gt.s32.totalorder %v687, %v708
        %v712 = vsel %vm711, %v687, %v708
        %713 = vrot.lane.b32.xlu0 %v318, 3
        %v714 = vpop.permute.xlu0 %713
        %715 = vrot.lane.b32.xlu0 %v322, 3
        %v716 = vpop.permute.xlu0 %715
        %v717 = vsel %vm440, %v714, %v716
        %v718 = vsel %vm440, %v716, %v714
        %v719 = vcombine.low %v718, %v717
        %v721 = vunpack.c.l.s4 1966171168
        %v722 = vunpack.c.0.s8 %v721
        %v723 = vlaneseq
        %v724 = vshrl.u32 %v723, 7
        %v725 = vsub.s32 %v722, %v724
        %v726 = vrot.slane %v719, %v725
        %v728 = vunpack.c.l.s4 1966171168
        %v729 = vunpack.c.0.s8 %v728
        %v730 = vlaneseq
        %v731 = vshrl.u32 %v730, 7
        %v732 = vsub.s32 %v729, %v731
        %v733 = vrot.slane %v726, %v732
        %vm734 = vcmp.lt.s32.totalorder %v710, %v733
        %v735 = vsel %vm734, %v710, %v733
        %vm736 = vcmp.gt.s32.totalorder %v712, %v733
        %v737 = vsel %vm736, %v712, %v733
        %738 = vrot.lane.b32.xlu0 %v318, 125
        %v739 = vpop.permute.xlu0 %738
        %740 = vrot.lane.b32.xlu0 %v322, 125
        %v741 = vpop.permute.xlu0 %740
        %v742 = vsel %vm455, %v739, %v741
        %v743 = vsel %vm455, %v741, %v739
        %v744 = vcombine.low %v742, %v743
        %v746 = vunpack.c.l.s4 1966171168
        %v747 = vunpack.c.0.s8 %v746
        %v748 = vlaneseq
        %v749 = vshrl.u32 %v748, 7
        %v750 = vsub.s32 %v747, %v749
        %v751 = vrot.slane %v744, %v750
        %v753 = vunpack.c.l.s4 1966171168
        %v754 = vunpack.c.0.s8 %v753
        %v755 = vlaneseq
        %v756 = vshrl.u32 %v755, 7
        %v757 = vsub.s32 %v754, %v756
        %v758 = vrot.slane %v751, %v757
        %vm759 = vcmp.lt.s32.totalorder %v735, %v758
        %v760 = vsel %vm759, %v735, %v758
        %vm761 = vcmp.gt.s32.totalorder %v737, %v758
        %v762 = vsel %vm761, %v737, %v758
        %v763 = vlaneseq
        %v764 = vshrl.u32 %v763, 7
        %v765 = vsub.s32 0, %v764
        %v766 = vrot.slane %v760, %v765
        %v767 = vlaneseq
        %v768 = vshrl.u32 %v767, 7
        %v769 = vsub.s32 1, %v768
        %v770 = vrot.slane %v760, %v769
        %771 = vrot.lane.b32.xlu0 %v766, 16
        %v772 = vpop.permute.xlu0 %771
        %773 = vrot.lane.b32.xlu0 %v770, 16
        %v774 = vpop.permute.xlu0 %773
        %v775 = vsel %vm470, %v772, %v774
        %v776 = vsel %vm470, %v774, %v772
        %v777 = vcombine.low %v776, %v775
        %v779 = vunpack.c.l.s4 1966171168
        %v780 = vunpack.c.0.s8 %v779
        %v781 = vlaneseq
        %v782 = vshrl.u32 %v781, 7
        %v783 = vsub.s32 %v780, %v782
        %v784 = vrot.slane %v777, %v783
        %v786 = vunpack.c.l.s4 1966171168
        %v787 = vunpack.c.0.s8 %v786
        %v788 = vlaneseq
        %v789 = vshrl.u32 %v788, 7
        %v790 = vsub.s32 %v787, %v789
        %v791 = vrot.slane %v784, %v790
        %vm792 = vcmp.lt.s32.totalorder %v760, %v791
        %v793 = vsel %vm792, %v760, %v791
        %v794 = vlaneseq
        %v795 = vshrl.u32 %v794, 7
        %v796 = vsub.s32 0, %v795
        %v797 = vrot.slane %v762, %v796
        %v798 = vlaneseq
        %v799 = vshrl.u32 %v798, 7
        %v800 = vsub.s32 1, %v799
        %v801 = vrot.slane %v762, %v800
        %802 = vrot.lane.b32.xlu0 %v797, 16
        %v803 = vpop.permute.xlu0 %802
        %804 = vrot.lane.b32.xlu0 %v801, 16
        %v805 = vpop.permute.xlu0 %804
        %v806 = vsel %vm470, %v803, %v805
        %v807 = vsel %vm470, %v805, %v803
        %v808 = vcombine.low %v807, %v806
        %v810 = vunpack.c.l.s4 1966171168
        %v811 = vunpack.c.0.s8 %v810
        %v812 = vlaneseq
        %v813 = vshrl.u32 %v812, 7
        %v814 = vsub.s32 %v811, %v813
        %v815 = vrot.slane %v808, %v814
        %v817 = vunpack.c.l.s4 1966171168
        %v818 = vunpack.c.0.s8 %v817
        %v819 = vlaneseq
        %v820 = vshrl.u32 %v819, 7
        %v821 = vsub.s32 %v818, %v820
        %v822 = vrot.slane %v815, %v821
        %vm823 = vcmp.gt.s32.totalorder %v762, %v822
        %v824 = vsel %vm823, %v762, %v822
        %825 = vrot.lane.b32.xlu0 %v766, 112
        %v826 = vpop.permute.xlu0 %825
        %827 = vrot.lane.b32.xlu0 %v770, 112
        %v828 = vpop.permute.xlu0 %827
        %v829 = vsel %vm491, %v826, %v828
        %v830 = vsel %vm491, %v828, %v826
        %v831 = vcombine.low %v829, %v830
        %v833 = vunpack.c.l.s4 1966171168
        %v834 = vunpack.c.0.s8 %v833
        %v835 = vlaneseq
        %v836 = vshrl.u32 %v835, 7
        %v837 = vsub.s32 %v834, %v836
        %v838 = vrot.slane %v831, %v837
        %v840 = vunpack.c.l.s4 1966171168
        %v841 = vunpack.c.0.s8 %v840
        %v842 = vlaneseq
        %v843 = vshrl.u32 %v842, 7
        %v844 = vsub.s32 %v841, %v843
        %v845 = vrot.slane %v838, %v844
        %vm846 = vcmp.lt.s32.totalorder %v793, %v845
        %v847 = vsel %vm846, %v793, %v845
        %848 = vrot.lane.b32.xlu0 %v797, 112
        %v849 = vpop.permute.xlu0 %848
        %850 = vrot.lane.b32.xlu0 %v801, 112
        %v851 = vpop.permute.xlu0 %850
        %v852 = vsel %vm491, %v849, %v851
        %v853 = vsel %vm491, %v851, %v849
        %v854 = vcombine.low %v852, %v853
        %v856 = vunpack.c.l.s4 1966171168
        %v857 = vunpack.c.0.s8 %v856
        %v858 = vlaneseq
        %v859 = vshrl.u32 %v858, 7
        %v860 = vsub.s32 %v857, %v859
        %v861 = vrot.slane %v854, %v860
        %v863 = vunpack.c.l.s4 1966171168
        %v864 = vunpack.c.0.s8 %v863
        %v865 = vlaneseq
        %v866 = vshrl.u32 %v865, 7
        %v867 = vsub.s32 %v864, %v866
        %v868 = vrot.slane %v861, %v867
        %vm869 = vcmp.gt.s32.totalorder %v824, %v868
        %v870 = vsel %vm869, %v824, %v868
        %871 = vrot.lane.b32.xlu0 %v766, 32
        %v872 = vpop.permute.xlu0 %871
        %873 = vrot.lane.b32.xlu0 %v770, 32
        %v874 = vpop.permute.xlu0 %873
        %v875 = vsel %vm512, %v872, %v874
        %v876 = vsel %vm512, %v874, %v872
        %v877 = vcombine.low %v876, %v875
        %v879 = vunpack.c.l.s4 1966171168
        %v880 = vunpack.c.0.s8 %v879
        %v881 = vlaneseq
        %v882 = vshrl.u32 %v881, 7
        %v883 = vsub.s32 %v880, %v882
        %v884 = vrot.slane %v877, %v883
        %v886 = vunpack.c.l.s4 1966171168
        %v887 = vunpack.c.0.s8 %v886
        %v888 = vlaneseq
        %v889 = vshrl.u32 %v888, 7
        %v890 = vsub.s32 %v887, %v889
        %v891 = vrot.slane %v884, %v890
        %vm892 = vcmp.lt.s32.totalorder %v847, %v891
        %v893 = vsel %vm892, %v847, %v891
        %894 = vrot.lane.b32.xlu0 %v797, 32
        %v895 = vpop.permute.xlu0 %894
        %896 = vrot.lane.b32.xlu0 %v801, 32
        %v897 = vpop.permute.xlu0 %896
        %v898 = vsel %vm512, %v895, %v897
        %v899 = vsel %vm512, %v897, %v895
        %v900 = vcombine.low %v899, %v898
        %v902 = vunpack.c.l.s4 1966171168
        %v903 = vunpack.c.0.s8 %v902
        %v904 = vlaneseq
        %v905 = vshrl.u32 %v904, 7
        %v906 = vsub.s32 %v903, %v905
        %v907 = vrot.slane %v900, %v906
        %v909 = vunpack.c.l.s4 1966171168
        %v910 = vunpack.c.0.s8 %v909
        %v911 = vlaneseq
        %v912 = vshrl.u32 %v911, 7
        %v913 = vsub.s32 %v910, %v912
        %v914 = vrot.slane %v907, %v913
        %vm915 = vcmp.gt.s32.totalorder %v870, %v914
        %v916 = vsel %vm915, %v870, %v914
        %917 = vrot.lane.b32.xlu0 %v766, 96
        %v918 = vpop.permute.xlu0 %917
        %919 = vrot.lane.b32.xlu0 %v770, 96
        %v920 = vpop.permute.xlu0 %919
        %v921 = vsel %vm533, %v918, %v920
        %v922 = vsel %vm533, %v920, %v918
        %v923 = vcombine.low %v921, %v922
        %v925 = vunpack.c.l.s4 1966171168
        %v926 = vunpack.c.0.s8 %v925
        %v927 = vlaneseq
        %v928 = vshrl.u32 %v927, 7
        %v929 = vsub.s32 %v926, %v928
        %v930 = vrot.slane %v923, %v929
        %v932 = vunpack.c.l.s4 1966171168
        %v933 = vunpack.c.0.s8 %v932
        %v934 = vlaneseq
        %v935 = vshrl.u32 %v934, 7
        %v936 = vsub.s32 %v933, %v935
        %v937 = vrot.slane %v930, %v936
        %vm938 = vcmp.lt.s32.totalorder %v893, %v937
        %v939 = vsel %vm938, %v893, %v937
        %940 = vrot.lane.b32.xlu0 %v797, 96
        %v941 = vpop.permute.xlu0 %940
        %942 = vrot.lane.b32.xlu0 %v801, 96
        %v943 = vpop.permute.xlu0 %942
        %v944 = vsel %vm533, %v941, %v943
        %v945 = vsel %vm533, %v943, %v941
        %v946 = vcombine.low %v944, %v945
        %v948 = vunpack.c.l.s4 1966171168
        %v949 = vunpack.c.0.s8 %v948
        %v950 = vlaneseq
        %v951 = vshrl.u32 %v950, 7
        %v952 = vsub.s32 %v949, %v951
        %v953 = vrot.slane %v946, %v952
        %v955 = vunpack.c.l.s4 1966171168
        %v956 = vunpack.c.0.s8 %v955
        %v957 = vlaneseq
        %v958 = vshrl.u32 %v957, 7
        %v959 = vsub.s32 %v956, %v958
        %v960 = vrot.slane %v953, %v959
        %vm961 = vcmp.gt.s32.totalorder %v916, %v960
        %v962 = vsel %vm961, %v916, %v960
        %963 = vrot.lane.b32.xlu0 %v766, 48
        %v964 = vpop.permute.xlu0 %963
        %965 = vrot.lane.b32.xlu0 %v770, 48
        %v966 = vpop.permute.xlu0 %965
        %v967 = vsel %vm554, %v964, %v966
        %v968 = vsel %vm554, %v966, %v964
        %v969 = vcombine.low %v968, %v967
        %v971 = vunpack.c.l.s4 1966171168
        %v972 = vunpack.c.0.s8 %v971
        %v973 = vlaneseq
        %v974 = vshrl.u32 %v973, 7
        %v975 = vsub.s32 %v972, %v974
        %v976 = vrot.slane %v969, %v975
        %v978 = vunpack.c.l.s4 1966171168
        %v979 = vunpack.c.0.s8 %v978
        %v980 = vlaneseq
        %v981 = vshrl.u32 %v980, 7
        %v982 = vsub.s32 %v979, %v981
        %v983 = vrot.slane %v976, %v982
        %vm984 = vcmp.lt.s32.totalorder %v939, %v983
        %v985 = vsel %vm984, %v939, %v983
        %986 = vrot.lane.b32.xlu0 %v797, 48
        %v987 = vpop.permute.xlu0 %986
        %988 = vrot.lane.b32.xlu0 %v801, 48
        %v989 = vpop.permute.xlu0 %988
        %v990 = vsel %vm554, %v987, %v989
        %v991 = vsel %vm554, %v989, %v987
        %v992 = vcombine.low %v991, %v990
        %v994 = vunpack.c.l.s4 1966171168
        %v995 = vunpack.c.0.s8 %v994
        %v996 = vlaneseq
        %v997 = vshrl.u32 %v996, 7
        %v998 = vsub.s32 %v995, %v997
        %v999 = vrot.slane %v992, %v998
        %v1001 = vunpack.c.l.s4 1966171168
        %v1002 = vunpack.c.0.s8 %v1001
        %v1003 = vlaneseq
        %v1004 = vshrl.u32 %v1003, 7
        %v1005 = vsub.s32 %v1002, %v1004
        %v1006 = vrot.slane %v999, %v1005
        %vm1007 = vcmp.gt.s32.totalorder %v962, %v1006
        %v1008 = vsel %vm1007, %v962, %v1006
        %1009 = vrot.lane.b32.xlu0 %v766, 80
        %v1010 = vpop.permute.xlu0 %1009
        %1011 = vrot.lane.b32.xlu0 %v770, 80
        %v1012 = vpop.permute.xlu0 %1011
        %v1013 = vsel %vm575, %v1010, %v1012
        %v1014 = vsel %vm575, %v1012, %v1010
        %v1015 = vcombine.low %v1013, %v1014
        %v1017 = vunpack.c.l.s4 1966171168
        %v1018 = vunpack.c.0.s8 %v1017
        %v1019 = vlaneseq
        %v1020 = vshrl.u32 %v1019, 7
        %v1021 = vsub.s32 %v1018, %v1020
        %v1022 = vrot.slane %v1015, %v1021
        %v1024 = vunpack.c.l.s4 1966171168
        %v1025 = vunpack.c.0.s8 %v1024
        %v1026 = vlaneseq
        %v1027 = vshrl.u32 %v1026, 7
        %v1028 = vsub.s32 %v1025, %v1027
        %v1029 = vrot.slane %v1022, %v1028
        %vm1030 = vcmp.lt.s32.totalorder %v985, %v1029
        %v1031 = vsel %vm1030, %v985, %v1029
        %1032 = vrot.lane.b32.xlu0 %v797, 80
        %v1033 = vpop.permute.xlu0 %1032
        %1034 = vrot.lane.b32.xlu0 %v801, 80
        %v1035 = vpop.permute.xlu0 %1034
        %v1036 = vsel %vm575, %v1033, %v1035
        %v1037 = vsel %vm575, %v1035, %v1033
        %v1038 = vcombine.low %v1036, %v1037
        %v1040 = vunpack.c.l.s4 1966171168
        %v1041 = vunpack.c.0.s8 %v1040
        %v1042 = vlaneseq
        %v1043 = vshrl.u32 %v1042, 7
        %v1044 = vsub.s32 %v1041, %v1043
        %v1045 = vrot.slane %v1038, %v1044
        %v1047 = vunpack.c.l.s4 1966171168
        %v1048 = vunpack.c.0.s8 %v1047
        %v1049 = vlaneseq
        %v1050 = vshrl.u32 %v1049, 7
        %v1051 = vsub.s32 %v1048, %v1050
        %v1052 = vrot.slane %v1045, %v1051
        %vm1053 = vcmp.gt.s32.totalorder %v1008, %v1052
        %v1054 = vsel %vm1053, %v1008, %v1052
        %vm1055 = vcmp.ne.s32.totalorder %v1031, %v1054
        %vm1056 = vmor %vm373, %vm1055
        %v1058 = vunpack.c.l.s4 1966171168
        %v1059 = vunpack.c.0.s8 %v1058
        %v1060 = vlaneseq
        %v1061 = vshrl.u32 %v1060, 7
        %v1062 = vsub.s32 %v1059, %v1061
        %v1063 = vrot.slane %v310, %v1062
        %v1065 = vunpack.c.l.s4 1966171168
        %v1066 = vunpack.c.0.s8 %v1065
        %v1067 = vlaneseq
        %v1068 = vshrl.u32 %v1067, 7
        %v1069 = vsub.s32 %v1066, %v1068
        %v1070 = vrot.slane %v1063, %v1069
        %v1072 = vsel %vm612, %v1070, 0.0
        %v1074 = vlaneseq
        %v1075 = vshrl.u32 %v1074, 7
        %v1076 = vsub.s32 0, %v1075
        %v1077 = vrot.slane %v1072, %v1076
        %v1078 = vlaneseq
        %v1079 = vshrl.u32 %v1078, 7
        %v1080 = vsub.s32 1, %v1079
        %v1081 = vrot.slane %v1072, %v1080
        %vm1084 = vcmask 1040384
        %v1085 = vsel %vm1084, %v1077, 0.0
        %v1086 = vsel %vm1084, %v1081, 0.0
        %v1087 = vadd.f32 %v1085, %v1086
        %1088 = vadd.xlane.f32.xlu0 %v1087
        %v1089 = vpop.xlane.xlu0 %1088
        %v1090 = vrot.slane %v1089, 4
        %v1091 = vadd.f32 %v1089, %v1090
        %v1092 = vrot.slane %v1091, 2
        %v1093 = vadd.f32 %v1091, %v1092
        %v1094 = vrot.slane %v1093, 1
        %v1095 = vadd.f32 %v1093, %v1094
        %s1096 = vtos %v1095
        %v1097 = vsel %vm1056, 1, 0
        %v1098 = vcvt.s32.f32 %v1097
        %v1100 = vlaneseq
        %v1101 = vshrl.u32 %v1100, 7
        %v1102 = vsub.s32 0, %v1101
        %v1103 = vrot.slane %v1098, %v1102
        %v1104 = vlaneseq
        %v1105 = vshrl.u32 %v1104, 7
        %v1106 = vsub.s32 1, %v1105
        %v1107 = vrot.slane %v1098, %v1106
        %v1110 = vsel %vm1084, %v1103, 0.0
        %v1111 = vsel %vm1084, %v1107, 0.0
        %v1112 = vadd.f32 %v1110, %v1111
        %1113 = vadd.xlane.f32.xlu0 %v1112
        %v1114 = vpop.xlane.xlu0 %1113
        %v1115 = vrot.slane %v1114, 4
        %v1116 = vadd.f32 %v1114, %v1115
        %v1117 = vrot.slane %v1116, 2
        %v1118 = vadd.f32 %v1116, %v1117
        %v1119 = vrot.slane %v1118, 1
        %v1120 = vadd.f32 %v1118, %v1119
        %s1121 = vtos %v1120
        %vm1122 = vmand %vm612, %vm1056
        %vm1123 = vcmp.eq.s32.totalorder %v361, %v318
        %vm1124 = vcmp.eq.s32.totalorder %v371, %v322
        %v1125 = vsel %vm1123, 1, 0
        %v1126 = vsel %vm1124, 1, 0
        %v1127 = vcombine.low %v1125, %v1126
        %v1129 = vunpack.c.l.s4 1966171168
        %v1130 = vunpack.c.0.s8 %v1129
        %v1131 = vlaneseq
        %v1132 = vshrl.u32 %v1131, 7
        %v1133 = vsub.s32 %v1130, %v1132
        %v1134 = vrot.slane %v1127, %v1133
        %v1136 = vunpack.c.l.s4 1966171168
        %v1137 = vunpack.c.0.s8 %v1136
        %v1138 = vlaneseq
        %v1139 = vshrl.u32 %v1138, 7
        %v1140 = vsub.s32 %v1137, %v1139
        %v1141 = vrot.slane %v1134, %v1140
        %vm1142 = vcmp.ne.s32.totalorder %v1141, 0
        %vm1143 = vmand %vm1122, %vm1142
        %v1144 = vsel %vm1143, %v1070, 0.0
        %v1146 = vlaneseq
        %v1147 = vshrl.u32 %v1146, 7
        %v1148 = vsub.s32 0, %v1147
        %v1149 = vrot.slane %v1144, %v1148
        %v1150 = vlaneseq
        %v1151 = vshrl.u32 %v1150, 7
        %v1152 = vsub.s32 1, %v1151
        %v1153 = vrot.slane %v1144, %v1152
        %v1156 = vsel %vm1084, %v1149, 0.0
        %v1157 = vsel %vm1084, %v1153, 0.0
        %v1158 = vadd.f32 %v1156, %v1157
        %1159 = vadd.xlane.f32.xlu0 %v1158
        %v1160 = vpop.xlane.xlu0 %1159
        %v1161 = vrot.slane %v1160, 4
        %v1162 = vadd.f32 %v1160, %v1161
        %v1163 = vrot.slane %v1162, 2
        %v1164 = vadd.f32 %v1162, %v1163
        %v1165 = vrot.slane %v1164, 1
        %v1166 = vadd.f32 %v1164, %v1165
        %s1167 = vtos %v1166
        %vm1168 = vcmp.eq.s32.totalorder %v379, 0
        %v1169 = vstv %s1167
        %v1170 = vsel %vm1168, %v1169, 0.0
        %vm1171 = vcmp.eq.s32.totalorder %v379, 1
        %v1172 = vstv %s1096
        %v1173 = vsel %vm1171, %v1172, 0.0
        %v1174 = vadd.f32 %v1170, %v1173
        %vm1175 = vcmp.eq.s32.totalorder %v379, 2
        %v1176 = vstv %s1121
        %v1177 = vsel %vm1175, %v1176, 0.0
        %v1178 = vadd.f32 %v1174, %v1177
        %1179 = vst [vmem:[%s261] sm:$0x1] %v1178
        %s1180 = sand.u32 %s109, 1
        %s1181 = scalar_lea.sflag [#allocation4], %s1180
        %s1182 = sand.u32 %s109, 1
        %s1183 = smul.addr %s1182, 8
        %s1184 = scalar_lea.vmem [#allocation7], %s1183
        %s1185 = sand.u32 %s135, 1
        %s1186 = scalar_lea.sflag [#allocation9], %s1185
        %s1187 = sand.u32 %s135, 1
        %s1188 = scalar_lea.vmem [#allocation8], %s1187
        // Predicated region
        $region41: #{tpu_custom_call.1} parent=31 // pred_check
          %p1189 = pneg %p119
        $region42: #{tpu_custom_call.1} parent=31 // pred_check_branch
          %1191 = sbr.rel (%p1189) target = $region44
        $region43: #{tpu_custom_call.1} parent=31 // pred_region
          %s1193 = ssub.s32 128, 128
          %1194 = vsyncadd %s1181, %s1193
          %s1195 = smul.addr %s28, 2
          %s1196 = smul.addr %s1195, 64
          %s1197 = scalar_lea.hbm %s3, %s1196
          %s1199 = sshll.u32 %s1184, 4
          %s1200 = int_to_ptr.vmem [resolvable:$true] %s1199
          %1202 = dma.vmem_to_hbm [thread:$0]  %s1200, 128, %s1197, %s1181
        $region44: #{tpu_custom_call.1} parent=31 // pred_fallthru
          _
        // Predicated region
        $region45: #{tpu_custom_call.1} parent=31 // pred_check
          %p1203 = pneg %p145
        $region46: #{tpu_custom_call.1} parent=31 // pred_check_branch
          %1205 = sbr.rel (%p1203) target = $region48
        $region47: #{tpu_custom_call.1} parent=31 // pred_region
          %s1207 = ssub.s32 16, 16
          %1208 = vsyncadd %s1186, %s1207
          %s1209 = smul.addr %s28, 16
          %s1210 = scalar_lea.hbm %s4, %s1209
          %s1212 = sshll.u32 %s1188, 4
          %s1213 = int_to_ptr.vmem [resolvable:$true] %s1212
          %1215 = dma.vmem_to_hbm [thread:$0]  %s1213, 16, %s1210, %s1186
        $region48: #{tpu_custom_call.1} parent=31 // pred_fallthru
          _
      $region32: #{tpu_custom_call.1} parent=5 // pred_fallthru
        _
      %p1216 = scmp.le.s32.totalorder 2, %s23
      // Predicated region
      $region49: #{tpu_custom_call.1} parent=5 // pred_check
        %p1217 = pneg %p1216
      $region50: #{tpu_custom_call.1} parent=5 // pred_check_branch
        %1219 = sbr.rel (%p1217) target = $region52
      $region51: #{tpu_custom_call.1} parent=5 // pred_region
        %s1220 = ssub.s32 %s23, 2
        // Predicated region
        $region53: #{tpu_custom_call.1} parent=51 // pred_check
          %p1221 = pneg %p125
        $region54: #{tpu_custom_call.1} parent=51 // pred_check_branch
          %1223 = sbr.rel (%p1221) target = $region56
        $region55: #{tpu_custom_call.1} parent=51 // pred_region
          %s1224 = sand.u32 %s110, 1
          %s1225 = scalar_lea.sflag [#allocation4], %s1224
          %s1226 = sand.u32 %s110, 1
          %s1227 = smul.addr %s1226, 8
          %s1228 = scalar_lea.vmem [#allocation7], %s1227
          %1229 = dma.done %s1225, 128
        $region56: #{tpu_custom_call.1} parent=51 // pred_fallthru
          _
        // Predicated region
        $region57: #{tpu_custom_call.1} parent=51 // pred_check
          %p1230 = pneg %p151
        $region58: #{tpu_custom_call.1} parent=51 // pred_check_branch
          %1232 = sbr.rel (%p1230) target = $region60
        $region59: #{tpu_custom_call.1} parent=51 // pred_region
          %s1233 = sand.u32 %s136, 1
          %s1234 = scalar_lea.sflag [#allocation9], %s1233
          %s1235 = sand.u32 %s136, 1
          %s1236 = scalar_lea.vmem [#allocation8], %s1235
          %1237 = dma.done %s1234, 16
        $region60: #{tpu_custom_call.1} parent=51 // pred_fallthru
          _
      $region52: #{tpu_custom_call.1} parent=5 // pred_fallthru
        _
    $region6: #{tpu_custom_call.1} parent=1 // loop_footer
      %s27 = sadd.s32 1, %s23
    $region7: #{tpu_custom_call.1} parent=1 // loop_footer_branch
      %22 = sbr.rel target = $region3
    $region8: #{tpu_custom_call.1} parent=1 // loop_exit
      _
    %1238 = vsyncpa [#allocation3], 1
    %s1239 = scalar_lea.sflag [#allocation3], 1
    %1240 = vsyncpa %s1239, 1
    %1241 = vsyncpa [#allocation6], 1
    %s1242 = scalar_lea.sflag [#allocation6], 1
    %1243 = vsyncpa %s1242, 1
    %1244 = vsyncpa [#allocation4], 1
    %s1245 = scalar_lea.sflag [#allocation4], 1
    %1246 = vsyncpa %s1245, 1
    %1247 = vsyncpa [#allocation9], 1
    %s1248 = scalar_lea.sflag [#allocation9], 1
    %1249 = vsyncpa %s1248, 1

</llo_original>
